<compile_context>
chip_gen: v6e
topology: v6e:2x2x1
jax: 0.10.0
libtpu: 0.0.40
codegen_flags: <defaults>
</compile_context>

<pallas_src>
from functools import partial

import jax
import jax.numpy as jnp
from jax import lax
from jax.experimental import pallas as pl
from jax.experimental.pallas import tpu as pltpu


def dwconv_kernel(cur_ref, nxt_ref, w_ref, b_ref, o_ref, xwin_ref, *, K, W, Ht):
    """One grid step: Ht output rows x W cols x 128 channels.

    cur_ref : (1, Ht, Wp, Ct)   input row-block h
    nxt_ref : (1, Ht, Wp, Ct)   input row-block h+1 (halo source, same array)
    w_ref   : (K*K, Ct)         f32 depthwise taps, channel on the lane axis
    b_ref   : (1, Ct)           f32 per-channel bias
    o_ref   : (1, Ht, W, Ct)    output block (lane-dense last dim)
    xwin_ref: (Ht+K-1, Wp, Ct)  f32 VMEM window scratch
    """
    Ct = o_ref.shape[-1]

    # ---- assemble the halo window in f32 (one cast per element, hoisted) ----
    def _copy_row(i, carry):
        xwin_ref[i] = cur_ref[0, i].astype(jnp.float32)
        return carry

    lax.fori_loop(0, Ht, _copy_row, 0)
    for j in range(K - 1):                       # K-1 halo rows from block h+1
        xwin_ref[Ht + j] = nxt_ref[0, j].astype(jnp.float32)

    bias = b_ref[0]                              # (Ct,) f32

    # ---- 49-tap MAC with a one-row, register-resident f32 accumulator -------
    def _row(r, carry):
        acc = jnp.broadcast_to(bias, (W, Ct))    # seed with bias (saves a pass)
        for kh in range(K):
            row = xwin_ref[r + kh]               # (Wp, Ct) f32, loaded once per kh
            for kw in range(K):
                acc = acc + row[kw:kw + W, :] * w_ref[kh * K + kw]
        o_ref[0, r] = acc.astype(o_ref.dtype)    # lane-dense store, once per row
        return carry

    lax.fori_loop(0, Ht, _row, 0)


def dwconv_pe_nhwc(x_nhwc, weight, bias, *, kernel_size=7, padding=3):
    """Channels-last core. x_nhwc: (N, H, W, C) -> (N, H, W, C)."""
    N, H, W, C = x_nhwc.shape
    K = kernel_size
    assert 2 * padding == K - 1, "expects 'same' padding"

    LANE = 128
    c_tile = LANE
    Cp = ((C + LANE - 1) // LANE) * LANE         # lane-dense channel padding
    n_ct = Cp // LANE

    # Output-row tiling. Halo rows come from the *next* Ht-row block, which
    # requires Ht >= K-1 (both 8 and 16 satisfy it).
    Ht = 16 if (H % 16 == 0 and H >= 32) else 8
    Hp_out = ((H + Ht - 1) // Ht) * Ht           # padded output rows (extras sliced off)
    n_h = Hp_out // Ht
    rows_in = (n_h + 1) * Ht                     # input rows incl. next-block halo source
    pad_top = padding
    pad_bot = rows_in - pad_top - H              # >= padding since Ht >= K-1
    Wp = W + K - 1

    x_pad = jnp.pad(
        x_nhwc,
        ((0, 0), (pad_top, pad_bot), (padding, padding), (0, Cp - C)))

    # PyTorch depthwise weight (C, 1, K, K) -> (K*K, Cp) f32; bias (C,) -> (1, Cp) f32.
    w = jnp.transpose(weight.astype(jnp.float32).reshape(C, K * K), (1, 0))
    w = jnp.pad(w, ((0, 0), (0, Cp - C)))
    b = jnp.pad(bias.astype(jnp.float32), (0, Cp - C)).reshape(1, Cp)

    kern = partial(dwconv_kernel, K=K, W=W, Ht=Ht)
    out = pl.pallas_call(
        kern,
        out_shape=jax.ShapeDtypeStruct((N, Hp_out, W, Cp), x_nhwc.dtype),
        grid_spec=pltpu.PrefetchScalarGridSpec(
            num_scalar_prefetch=0,
            grid=(N, n_ct, n_h),
            in_specs=[
                # current Ht-row block
                pl.BlockSpec((1, Ht, Wp, c_tile), lambda n, c, h: (n, h, 0, c)),
                # next Ht-row block (supplies the K-1 halo rows)
                pl.BlockSpec((1, Ht, Wp, c_tile), lambda n, c, h: (n, h + 1, 0, c)),
                pl.BlockSpec((K * K, c_tile), lambda n, c, h: (0, c)),
                pl.BlockSpec((1, c_tile), lambda n, c, h: (0, c)),
            ],
            out_specs=pl.BlockSpec((1, Ht, W, c_tile), lambda n, c, h: (n, h, 0, c)),
            scratch_shapes=[pltpu.VMEM((Ht + K - 1, Wp, c_tile), jnp.float32)],
        ),
        compiler_params=pltpu.CompilerParams(
            dimension_semantics=("parallel", "parallel", "parallel"),
            vmem_limit_bytes=48 * 1024 * 1024,   # safe on v7x (64 MiB) and below
        ),
    )(x_pad, x_pad, w, b)

    return out[:, :H, :, :C]


def dwconv_pe(x, weight, bias, *, kernel_size=7, stride=1, padding=3):
    """PyTorch-layout entry point. x: (N, C, H, W) NCHW."""
    assert stride == 1, "DWConvPE uses stride 1"
    x_nhwc = jnp.transpose(x, (0, 2, 3, 1))
    out = dwconv_pe_nhwc(x_nhwc, weight, bias,
                         kernel_size=kernel_size, padding=padding)
    return jnp.transpose(out, (0, 3, 1, 2))


if __name__ == "__main__":
    key = jax.random.PRNGKey(0)
    k_x, k_w, k_b, k_x2, k_w2, k_b2 = jax.random.split(key, 6)
    K = 7

    # --- test 1: module-default small shape, f32 -----------------------------
    N, C, H, W = 2, 4, 16, 16
    x = jax.random.normal(k_x, (N, C, H, W), dtype=jnp.float32)
    weight = jax.random.normal(k_w, (C, 1, K, K), dtype=jnp.float32) * 0.1
    bias = jax.random.normal(k_b, (C,), dtype=jnp.float32) * 0.1

    out = jax.block_until_ready(dwconv_pe(x, weight, bias))
    ref = jax.lax.conv_general_dilated(
        x, weight, window_strides=(1, 1), padding=((3, 3), (3, 3)),
        feature_group_count=C, dimension_numbers=("NCHW", "OIHW", "NCHW"),
    ) + bias[None, :, None, None]
    assert out.shape == (N, C, H, W)
    assert jnp.allclose(out, ref, atol=1e-4, rtol=1e-4), "f32 mismatch vs reference"

    # --- test 2: bf16, C not a multiple of 128 (2 channel tiles), H % Ht != 0 -
    N2, C2, H2, W2 = 1, 192, 14, 14
    x2 = jax.random.normal(k_x2, (N2, C2, H2, W2), dtype=jnp.float32).astype(jnp.bfloat16)
    w2 = (jax.random.normal(k_w2, (C2, 1, K, K), dtype=jnp.float32) * 0.1).astype(jnp.bfloat16)
    b2 = (jax.random.normal(k_b2, (C2,), dtype=jnp.float32) * 0.1).astype(jnp.bfloat16)

    out2 = jax.block_until_ready(dwconv_pe(x2, w2, b2))
    ref2 = jax.lax.conv_general_dilated(
        x2.astype(jnp.float32), w2.astype(jnp.float32),
        window_strides=(1, 1), padding=((3, 3), (3, 3)),
        feature_group_count=C2, dimension_numbers=("NCHW", "OIHW", "NCHW"),
    ) + b2.astype(jnp.float32)[None, :, None, None]
    assert out2.shape == (N2, C2, H2, W2)
    assert jnp.allclose(out2.astype(jnp.float32), ref2, atol=2e-2, rtol=2e-2), \
        "bf16 mismatch vs reference"

    print("KERNEL_OK")
</pallas_src>

<mosaic_0001>
module attributes {stable_mosaic.version = 11 : i64} {
  func.func @dwconv_kernel(%arg0: i32, %arg1: i32, %arg2: i32, %arg3: memref<1x8x22x128xf32, #tpu.memory_space<vmem>>, %arg4: memref<1x8x22x128xf32, #tpu.memory_space<vmem>>, %arg5: memref<49x128xf32, #tpu.memory_space<vmem>>, %arg6: memref<1x128xf32, #tpu.memory_space<vmem>>, %arg7: memref<1x8x16x128xf32, #tpu.memory_space<vmem>>, %arg8: memref<14x22x128xf32, #tpu.memory_space<vmem>>) attributes {dimension_semantics = [#tpu.dimension_semantics<parallel>, #tpu.dimension_semantics<parallel>, #tpu.dimension_semantics<parallel>], iteration_bounds = array<i64: 2, 1, 2>, scalar_prefetch = 0 : i64, scratch_operands = 1 : i64, tpu.core_type = #tpu.core_type<tc>, window_params = [{transform_indices = @transform_0, window_bounds = array<i64: 1, 8, 22, 128>}, {transform_indices = @transform_1, window_bounds = array<i64: 1, 8, 22, 128>}, {transform_indices = @transform_2, window_bounds = array<i64: 49, 128>}, {transform_indices = @transform_3, window_bounds = array<i64: 1, 128>}, {transform_indices = @transform_4, window_bounds = array<i64: 1, 8, 16, 128>}]} {
    %c0_i32 = arith.constant 0 : i32
    %c8_i32 = arith.constant 8 : i32
    %0 = arith.addi %c0_i32, %c8_i32 : i32
    %c1_i32 = arith.constant 1 : i32
    scf.for %arg9 = %c0_i32 to %0 step %c1_i32  : i32 {
      %c0_37 = arith.constant 0 : index
      %34 = arith.index_cast %arg9 : i32 to index
      %c0_38 = arith.constant 0 : index
      %c0_39 = arith.constant 0 : index
      %35 = vector.load %arg3[%c0_37, %34, %c0_38, %c0_39] : memref<1x8x22x128xf32, #tpu.memory_space<vmem>>, vector<1x1x22x128xf32>
      %36 = vector.shape_cast %35 : vector<1x1x22x128xf32> to vector<22x128xf32>
      %37 = arith.index_cast %arg9 : i32 to index
      %c0_40 = arith.constant 0 : index
      %c0_41 = arith.constant 0 : index
      %38 = vector.load %arg8[%37, %c0_40, %c0_41] : memref<14x22x128xf32, #tpu.memory_space<vmem>>, vector<1x22x128xf32>
      %39 = vector.shape_cast %38 : vector<1x22x128xf32> to vector<22x128xf32>
      %40 = vector.shape_cast %36 : vector<22x128xf32> to vector<1x22x128xf32>
      tpu.vector_store %arg8[%37, %c0_40, %c0_41], %40 {strides = array<i32>} : memref<14x22x128xf32, #tpu.memory_space<vmem>>, vector<1x22x128xf32>,
    }
    %c8_i32_0 = arith.constant 8 : i32
    %c0 = arith.constant 0 : index
    %c0_1 = arith.constant 0 : index
    %c0_2 = arith.constant 0 : index
    %c0_3 = arith.constant 0 : index
    %1 = vector.load %arg4[%c0, %c0_1, %c0_2, %c0_3] : memref<1x8x22x128xf32, #tpu.memory_space<vmem>>, vector<1x1x22x128xf32>
    %2 = vector.shape_cast %1 : vector<1x1x22x128xf32> to vector<22x128xf32>
    %c8 = arith.constant 8 : index
    %c0_4 = arith.constant 0 : index
    %c0_5 = arith.constant 0 : index
    %3 = vector.load %arg8[%c8, %c0_4, %c0_5] : memref<14x22x128xf32, #tpu.memory_space<vmem>>, vector<1x22x128xf32>
    %4 = vector.shape_cast %3 : vector<1x22x128xf32> to vector<22x128xf32>
    %5 = vector.shape_cast %2 : vector<22x128xf32> to vector<1x22x128xf32>
    tpu.vector_store %arg8[%c8, %c0_4, %c0_5], %5 {strides = array<i32>} : memref<14x22x128xf32, #tpu.memory_space<vmem>>, vector<1x22x128xf32>,
    %c0_6 = arith.constant 0 : index
    %c1 = arith.constant 1 : index
    %c0_7 = arith.constant 0 : index
    %c0_8 = arith.constant 0 : index
    %6 = vector.load %arg4[%c0_6, %c1, %c0_7, %c0_8] : memref<1x8x22x128xf32, #tpu.memory_space<vmem>>, vector<1x1x22x128xf32>
    %7 = vector.shape_cast %6 : vector<1x1x22x128xf32> to vector<22x128xf32>
    %c9 = arith.constant 9 : index
    %c0_9 = arith.constant 0 : index
    %c0_10 = arith.constant 0 : index
    %8 = vector.load %arg8[%c9, %c0_9, %c0_10] : memref<14x22x128xf32, #tpu.memory_space<vmem>>, vector<1x22x128xf32>
    %9 = vector.shape_cast %8 : vector<1x22x128xf32> to vector<22x128xf32>
    %10 = vector.shape_cast %7 : vector<22x128xf32> to vector<1x22x128xf32>
    tpu.vector_store %arg8[%c9, %c0_9, %c0_10], %10 {strides = array<i32>} : memref<14x22x128xf32, #tpu.memory_space<vmem>>, vector<1x22x128xf32>,
    %c0_11 = arith.constant 0 : index
    %c2 = arith.constant 2 : index
    %c0_12 = arith.constant 0 : index
    %c0_13 = arith.constant 0 : index
    %11 = vector.load %arg4[%c0_11, %c2, %c0_12, %c0_13] : memref<1x8x22x128xf32, #tpu.memory_space<vmem>>, vector<1x1x22x128xf32>
    %12 = vector.shape_cast %11 : vector<1x1x22x128xf32> to vector<22x128xf32>
    %c10 = arith.constant 10 : index
    %c0_14 = arith.constant 0 : index
    %c0_15 = arith.constant 0 : index
    %13 = vector.load %arg8[%c10, %c0_14, %c0_15] : memref<14x22x128xf32, #tpu.memory_space<vmem>>, vector<1x22x128xf32>
    %14 = vector.shape_cast %13 : vector<1x22x128xf32> to vector<22x128xf32>
    %15 = vector.shape_cast %12 : vector<22x128xf32> to vector<1x22x128xf32>
    tpu.vector_store %arg8[%c10, %c0_14, %c0_15], %15 {strides = array<i32>} : memref<14x22x128xf32, #tpu.memory_space<vmem>>, vector<1x22x128xf32>,
    %c0_16 = arith.constant 0 : index
    %c3 = arith.constant 3 : index
    %c0_17 = arith.constant 0 : index
    %c0_18 = arith.constant 0 : index
    %16 = vector.load %arg4[%c0_16, %c3, %c0_17, %c0_18] : memref<1x8x22x128xf32, #tpu.memory_space<vmem>>, vector<1x1x22x128xf32>
    %17 = vector.shape_cast %16 : vector<1x1x22x128xf32> to vector<22x128xf32>
    %c11 = arith.constant 11 : index
    %c0_19 = arith.constant 0 : index
    %c0_20 = arith.constant 0 : index
    %18 = vector.load %arg8[%c11, %c0_19, %c0_20] : memref<14x22x128xf32, #tpu.memory_space<vmem>>, vector<1x22x128xf32>
    %19 = vector.shape_cast %18 : vector<1x22x128xf32> to vector<22x128xf32>
    %20 = vector.shape_cast %17 : vector<22x128xf32> to vector<1x22x128xf32>
    tpu.vector_store %arg8[%c11, %c0_19, %c0_20], %20 {strides = array<i32>} : memref<14x22x128xf32, #tpu.memory_space<vmem>>, vector<1x22x128xf32>,
    %c0_21 = arith.constant 0 : index
    %c4 = arith.constant 4 : index
    %c0_22 = arith.constant 0 : index
    %c0_23 = arith.constant 0 : index
    %21 = vector.load %arg4[%c0_21, %c4, %c0_22, %c0_23] : memref<1x8x22x128xf32, #tpu.memory_space<vmem>>, vector<1x1x22x128xf32>
    %22 = vector.shape_cast %21 : vector<1x1x22x128xf32> to vector<22x128xf32>
    %c12 = arith.constant 12 : index
    %c0_24 = arith.constant 0 : index
    %c0_25 = arith.constant 0 : index
    %23 = vector.load %arg8[%c12, %c0_24, %c0_25] : memref<14x22x128xf32, #tpu.memory_space<vmem>>, vector<1x22x128xf32>
    %24 = vector.shape_cast %23 : vector<1x22x128xf32> to vector<22x128xf32>
    %25 = vector.shape_cast %22 : vector<22x128xf32> to vector<1x22x128xf32>
    tpu.vector_store %arg8[%c12, %c0_24, %c0_25], %25 {strides = array<i32>} : memref<14x22x128xf32, #tpu.memory_space<vmem>>, vector<1x22x128xf32>,
    %c0_26 = arith.constant 0 : index
    %c5 = arith.constant 5 : index
    %c0_27 = arith.constant 0 : index
    %c0_28 = arith.constant 0 : index
    %26 = vector.load %arg4[%c0_26, %c5, %c0_27, %c0_28] : memref<1x8x22x128xf32, #tpu.memory_space<vmem>>, vector<1x1x22x128xf32>
    %27 = vector.shape_cast %26 : vector<1x1x22x128xf32> to vector<22x128xf32>
    %c13 = arith.constant 13 : index
    %c0_29 = arith.constant 0 : index
    %c0_30 = arith.constant 0 : index
    %28 = vector.load %arg8[%c13, %c0_29, %c0_30] : memref<14x22x128xf32, #tpu.memory_space<vmem>>, vector<1x22x128xf32>
    %29 = vector.shape_cast %28 : vector<1x22x128xf32> to vector<22x128xf32>
    %30 = vector.shape_cast %27 : vector<22x128xf32> to vector<1x22x128xf32>
    tpu.vector_store %arg8[%c13, %c0_29, %c0_30], %30 {strides = array<i32>} : memref<14x22x128xf32, #tpu.memory_space<vmem>>, vector<1x22x128xf32>,
    %c0_31 = arith.constant 0 : index
    %c0_32 = arith.constant 0 : index
    %31 = vector.load %arg6[%c0_31, %c0_32] : memref<1x128xf32, #tpu.memory_space<vmem>>, vector<1x128xf32>
    %32 = vector.shape_cast %31 : vector<1x128xf32> to vector<128xf32>
    %c0_i32_33 = arith.constant 0 : i32
    %c8_i32_34 = arith.constant 8 : i32
    %33 = arith.addi %c0_i32_33, %c8_i32_34 : i32
    %c1_i32_35 = arith.constant 1 : i32
    scf.for %arg9 = %c0_i32_33 to %33 step %c1_i32_35  : i32 {
      %34 = vector.shape_cast %32 : vector<128xf32> to vector<1x128xf32>
      %35 = vector.broadcast %34 : vector<1x128xf32> to vector<16x128xf32>
      %c0_i32_37 = arith.constant 0 : i32
      %36 = arith.addi %arg9, %c0_i32_37 : i32
      %37 = arith.index_cast %36 : i32 to index
      %c0_38 = arith.constant 0 : index
      %c0_39 = arith.constant 0 : index
      %38 = vector.load %arg8[%37, %c0_38, %c0_39] : memref<14x22x128xf32, #tpu.memory_space<vmem>>, vector<1x22x128xf32>
      %39 = vector.shape_cast %38 : vector<1x22x128xf32> to vector<22x128xf32>
      %40 = vector.extract_strided_slice %39 {offsets = [0, 0], sizes = [16, 128], strides = [1, 1]} : vector<22x128xf32> to vector<16x128xf32>
      %c0_40 = arith.constant 0 : index
      %c0_41 = arith.constant 0 : index
      %41 = vector.load %arg5[%c0_40, %c0_41] : memref<49x128xf32, #tpu.memory_space<vmem>>, vector<1x128xf32>
      %42 = vector.shape_cast %41 : vector<1x128xf32> to vector<128xf32>
      %43 = vector.shape_cast %42 : vector<128xf32> to vector<1x128xf32>
      %44 = vector.broadcast %43 : vector<1x128xf32> to vector<16x128xf32>
      %45 = arith.mulf %40, %44 : vector<16x128xf32>
      %46 = arith.addf %35, %45 : vector<16x128xf32>
      %47 = vector.extract_strided_slice %39 {offsets = [1, 0], sizes = [16, 128], strides = [1, 1]} : vector<22x128xf32> to vector<16x128xf32>
      %c1_42 = arith.constant 1 : index
      %c0_43 = arith.constant 0 : index
      %48 = vector.load %arg5[%c1_42, %c0_43] : memref<49x128xf32, #tpu.memory_space<vmem>>, vector<1x128xf32>
      %49 = vector.shape_cast %48 : vector<1x128xf32> to vector<128xf32>
      %50 = vector.shape_cast %49 : vector<128xf32> to vector<1x128xf32>
      %51 = vector.broadcast %50 : vector<1x128xf32> to vector<16x128xf32>
      %52 = arith.mulf %47, %51 : vector<16x128xf32>
      %53 = arith.addf %46, %52 : vector<16x128xf32>
      %54 = vector.extract_strided_slice %39 {offsets = [2, 0], sizes = [16, 128], strides = [1, 1]} : vector<22x128xf32> to vector<16x128xf32>
      %c2_44 = arith.constant 2 : index
      %c0_45 = arith.constant 0 : index
      %55 = vector.load %arg5[%c2_44, %c0_45] : memref<49x128xf32, #tpu.memory_space<vmem>>, vector<1x128xf32>
      %56 = vector.shape_cast %55 : vector<1x128xf32> to vector<128xf32>
      %57 = vector.shape_cast %56 : vector<128xf32> to vector<1x128xf32>
      %58 = vector.broadcast %57 : vector<1x128xf32> to vector<16x128xf32>
      %59 = arith.mulf %54, %58 : vector<16x128xf32>
      %60 = arith.addf %53, %59 : vector<16x128xf32>
      %61 = vector.extract_strided_slice %39 {offsets = [3, 0], sizes = [16, 128], strides = [1, 1]} : vector<22x128xf32> to vector<16x128xf32>
      %c3_46 = arith.constant 3 : index
      %c0_47 = arith.constant 0 : index
      %62 = vector.load %arg5[%c3_46, %c0_47] : memref<49x128xf32, #tpu.memory_space<vmem>>, vector<1x128xf32>
      %63 = vector.shape_cast %62 : vector<1x128xf32> to vector<128xf32>
      %64 = vector.shape_cast %63 : vector<128xf32> to vector<1x128xf32>
      %65 = vector.broadcast %64 : vector<1x128xf32> to vector<16x128xf32>
      %66 = arith.mulf %61, %65 : vector<16x128xf32>
      %67 = arith.addf %60, %66 : vector<16x128xf32>
      %68 = vector.extract_strided_slice %39 {offsets = [4, 0], sizes = [16, 128], strides = [1, 1]} : vector<22x128xf32> to vector<16x128xf32>
      %c4_48 = arith.constant 4 : index
      %c0_49 = arith.constant 0 : index
      %69 = vector.load %arg5[%c4_48, %c0_49] : memref<49x128xf32, #tpu.memory_space<vmem>>, vector<1x128xf32>
      %70 = vector.shape_cast %69 : vector<1x128xf32> to vector<128xf32>
      %71 = vector.shape_cast %70 : vector<128xf32> to vector<1x128xf32>
      %72 = vector.broadcast %71 : vector<1x128xf32> to vector<16x128xf32>
      %73 = arith.mulf %68, %72 : vector<16x128xf32>
      %74 = arith.addf %67, %73 : vector<16x128xf32>
      %75 = vector.extract_strided_slice %39 {offsets = [5, 0], sizes = [16, 128], strides = [1, 1]} : vector<22x128xf32> to vector<16x128xf32>
      %c5_50 = arith.constant 5 : index
      %c0_51 = arith.constant 0 : index
      %76 = vector.load %arg5[%c5_50, %c0_51] : memref<49x128xf32, #tpu.memory_space<vmem>>, vector<1x128xf32>
      %77 = vector.shape_cast %76 : vector<1x128xf32> to vector<128xf32>
      %78 = vector.shape_cast %77 : vector<128xf32> to vector<1x128xf32>
      %79 = vector.broadcast %78 : vector<1x128xf32> to vector<16x128xf32>
      %80 = arith.mulf %75, %79 : vector<16x128xf32>
      %81 = arith.addf %74, %80 : vector<16x128xf32>
      %82 = vector.extract_strided_slice %39 {offsets = [6, 0], sizes = [16, 128], strides = [1, 1]} : vector<22x128xf32> to vector<16x128xf32>
      %c6 = arith.constant 6 : index
      %c0_52 = arith.constant 0 : index
      %83 = vector.load %arg5[%c6, %c0_52] : memref<49x128xf32, #tpu.memory_space<vmem>>, vector<1x128xf32>
      %84 = vector.shape_cast %83 : vector<1x128xf32> to vector<128xf32>
      %85 = vector.shape_cast %84 : vector<128xf32> to vector<1x128xf32>
      %86 = vector.broadcast %85 : vector<1x128xf32> to vector<16x128xf32>
      %87 = arith.mulf %82, %86 : vector<16x128xf32>
      %88 = arith.addf %81, %87 : vector<16x128xf32>
      %c1_i32_53 = arith.constant 1 : i32
      %89 = arith.addi %arg9, %c1_i32_53 : i32
      %90 = arith.index_cast %89 : i32 to index
      %c0_54 = arith.constant 0 : index
      %c0_55 = arith.constant 0 : index
      %91 = vector.load %arg8[%90, %c0_54, %c0_55] : memref<14x22x128xf32, #tpu.memory_space<vmem>>, vector<1x22x128xf32>
      %92 = vector.shape_cast %91 : vector<1x22x128xf32> to vector<22x128xf32>
      %93 = vector.extract_strided_slice %92 {offsets = [0, 0], sizes = [16, 128], strides = [1, 1]} : vector<22x128xf32> to vector<16x128xf32>
      %c7 = arith.constant 7 : index
      %c0_56 = arith.constant 0 : index
      %94 = vector.load %arg5[%c7, %c0_56] : memref<49x128xf32, #tpu.memory_space<vmem>>, vector<1x128xf32>
      %95 = vector.shape_cast %94 : vector<1x128xf32> to vector<128xf32>
      %96 = vector.shape_cast %95 : vector<128xf32> to vector<1x128xf32>
      %97 = vector.broadcast %96 : vector<1x128xf32> to vector<16x128xf32>
      %98 = arith.mulf %93, %97 : vector<16x128xf32>
      %99 = arith.addf %88, %98 : vector<16x128xf32>
      %100 = vector.extract_strided_slice %92 {offsets = [1, 0], sizes = [16, 128], strides = [1, 1]} : vector<22x128xf32> to vector<16x128xf32>
      %c8_57 = arith.constant 8 : index
      %c0_58 = arith.constant 0 : index
      %101 = vector.load %arg5[%c8_57, %c0_58] : memref<49x128xf32, #tpu.memory_space<vmem>>, vector<1x128xf32>
      %102 = vector.shape_cast %101 : vector<1x128xf32> to vector<128xf32>
      %103 = vector.shape_cast %102 : vector<128xf32> to vector<1x128xf32>
      %104 = vector.broadcast %103 : vector<1x128xf32> to vector<16x128xf32>
      %105 = arith.mulf %100, %104 : vector<16x128xf32>
      %106 = arith.addf %99, %105 : vector<16x128xf32>
      %107 = vector.extract_strided_slice %92 {offsets = [2, 0], sizes = [16, 128], strides = [1, 1]} : vector<22x128xf32> to vector<16x128xf32>
      %c9_59 = arith.constant 9 : index
      %c0_60 = arith.constant 0 : index
      %108 = vector.load %arg5[%c9_59, %c0_60] : memref<49x128xf32, #tpu.memory_space<vmem>>, vector<1x128xf32>
      %109 = vector.shape_cast %108 : vector<1x128xf32> to vector<128xf32>
      %110 = vector.shape_cast %109 : vector<128xf32> to vector<1x128xf32>
      %111 = vector.broadcast %110 : vector<1x128xf32> to vector<16x128xf32>
      %112 = arith.mulf %107, %111 : vector<16x128xf32>
      %113 = arith.addf %106, %112 : vector<16x128xf32>
      %114 = vector.extract_strided_slice %92 {offsets = [3, 0], sizes = [16, 128], strides = [1, 1]} : vector<22x128xf32> to vector<16x128xf32>
      %c10_61 = arith.constant 10 : index
      %c0_62 = arith.constant 0 : index
      %115 = vector.load %arg5[%c10_61, %c0_62] : memref<49x128xf32, #tpu.memory_space<vmem>>, vector<1x128xf32>
      %116 = vector.shape_cast %115 : vector<1x128xf32> to vector<128xf32>
      %117 = vector.shape_cast %116 : vector<128xf32> to vector<1x128xf32>
      %118 = vector.broadcast %117 : vector<1x128xf32> to vector<16x128xf32>
      %119 = arith.mulf %114, %118 : vector<16x128xf32>
      %120 = arith.addf %113, %119 : vector<16x128xf32>
      %121 = vector.extract_strided_slice %92 {offsets = [4, 0], sizes = [16, 128], strides = [1, 1]} : vector<22x128xf32> to vector<16x128xf32>
      %c11_63 = arith.constant 11 : index
      %c0_64 = arith.constant 0 : index
      %122 = vector.load %arg5[%c11_63, %c0_64] : memref<49x128xf32, #tpu.memory_space<vmem>>, vector<1x128xf32>
      %123 = vector.shape_cast %122 : vector<1x128xf32> to vector<128xf32>
      %124 = vector.shape_cast %123 : vector<128xf32> to vector<1x128xf32>
      %125 = vector.broadcast %124 : vector<1x128xf32> to vector<16x128xf32>
      %126 = arith.mulf %121, %125 : vector<16x128xf32>
      %127 = arith.addf %120, %126 : vector<16x128xf32>
      %128 = vector.extract_strided_slice %92 {offsets = [5, 0], sizes = [16, 128], strides = [1, 1]} : vector<22x128xf32> to vector<16x128xf32>
      %c12_65 = arith.constant 12 : index
      %c0_66 = arith.constant 0 : index
      %129 = vector.load %arg5[%c12_65, %c0_66] : memref<49x128xf32, #tpu.memory_space<vmem>>, vector<1x128xf32>
      %130 = vector.shape_cast %129 : vector<1x128xf32> to vector<128xf32>
      %131 = vector.shape_cast %130 : vector<128xf32> to vector<1x128xf32>
      %132 = vector.broadcast %131 : vector<1x128xf32> to vector<16x128xf32>
      %133 = arith.mulf %128, %132 : vector<16x128xf32>
      %134 = arith.addf %127, %133 : vector<16x128xf32>
      %135 = vector.extract_strided_slice %92 {offsets = [6, 0], sizes = [16, 128], strides = [1, 1]} : vector<22x128xf32> to vector<16x128xf32>
      %c13_67 = arith.constant 13 : index
      %c0_68 = arith.constant 0 : index
      %136 = vector.load %arg5[%c13_67, %c0_68] : memref<49x128xf32, #tpu.memory_space<vmem>>, vector<1x128xf32>
      %137 = vector.shape_cast %136 : vector<1x128xf32> to vector<128xf32>
      %138 = vector.shape_cast %137 : vector<128xf32> to vector<1x128xf32>
      %139 = vector.broadcast %138 : vector<1x128xf32> to vector<16x128xf32>
      %140 = arith.mulf %135, %139 : vector<16x128xf32>
      %141 = arith.addf %134, %140 : vector<16x128xf32>
      %c2_i32 = arith.constant 2 : i32
      %142 = arith.addi %arg9, %c2_i32 : i32
      %143 = arith.index_cast %142 : i32 to index
      %c0_69 = arith.constant 0 : index
      %c0_70 = arith.constant 0 : index
      %144 = vector.load %arg8[%143, %c0_69, %c0_70] : memref<14x22x128xf32, #tpu.memory_space<vmem>>, vector<1x22x128xf32>
      %145 = vector.shape_cast %144 : vector<1x22x128xf32> to vector<22x128xf32>
      %146 = vector.extract_strided_slice %145 {offsets = [0, 0], sizes = [16, 128], strides = [1, 1]} : vector<22x128xf32> to vector<16x128xf32>
      %c14 = arith.constant 14 : index
      %c0_71 = arith.constant 0 : index
      %147 = vector.load %arg5[%c14, %c0_71] : memref<49x128xf32, #tpu.memory_space<vmem>>, vector<1x128xf32>
      %148 = vector.shape_cast %147 : vector<1x128xf32> to vector<128xf32>
      %149 = vector.shape_cast %148 : vector<128xf32> to vector<1x128xf32>
      %150 = vector.broadcast %149 : vector<1x128xf32> to vector<16x128xf32>
      %151 = arith.mulf %146, %150 : vector<16x128xf32>
      %152 = arith.addf %141, %151 : vector<16x128xf32>
      %153 = vector.extract_strided_slice %145 {offsets = [1, 0], sizes = [16, 128], strides = [1, 1]} : vector<22x128xf32> to vector<16x128xf32>
      %c15 = arith.constant 15 : index
      %c0_72 = arith.constant 0 : index
      %154 = vector.load %arg5[%c15, %c0_72] : memref<49x128xf32, #tpu.memory_space<vmem>>, vector<1x128xf32>
      %155 = vector.shape_cast %154 : vector<1x128xf32> to vector<128xf32>
      %156 = vector.shape_cast %155 : vector<128xf32> to vector<1x128xf32>
      %157 = vector.broadcast %156 : vector<1x128xf32> to vector<16x128xf32>
      %158 = arith.mulf %153, %157 : vector<16x128xf32>
      %159 = arith.addf %152, %158 : vector<16x128xf32>
      %160 = vector.extract_strided_slice %145 {offsets = [2, 0], sizes = [16, 128], strides = [1, 1]} : vector<22x128xf32> to vector<16x128xf32>
      %c16 = arith.constant 16 : index
      %c0_73 = arith.constant 0 : index
      %161 = vector.load %arg5[%c16, %c0_73] : memref<49x128xf32, #tpu.memory_space<vmem>>, vector<1x128xf32>
      %162 = vector.shape_cast %161 : vector<1x128xf32> to vector<128xf32>
      %163 = vector.shape_cast %162 : vector<128xf32> to vector<1x128xf32>
      %164 = vector.broadcast %163 : vector<1x128xf32> to vector<16x128xf32>
      %165 = arith.mulf %160, %164 : vector<16x128xf32>
      %166 = arith.addf %159, %165 : vector<16x128xf32>
      %167 = vector.extract_strided_slice %145 {offsets = [3, 0], sizes = [16, 128], strides = [1, 1]} : vector<22x128xf32> to vector<16x128xf32>
      %c17 = arith.constant 17 : index
      %c0_74 = arith.constant 0 : index
      %168 = vector.load %arg5[%c17, %c0_74] : memref<49x128xf32, #tpu.memory_space<vmem>>, vector<1x128xf32>
      %169 = vector.shape_cast %168 : vector<1x128xf32> to vector<128xf32>
      %170 = vector.shape_cast %169 : vector<128xf32> to vector<1x128xf32>
      %171 = vector.broadcast %170 : vector<1x128xf32> to vector<16x128xf32>
      %172 = arith.mulf %167, %171 : vector<16x128xf32>
      %173 = arith.addf %166, %172 : vector<16x128xf32>
      %174 = vector.extract_strided_slice %145 {offsets = [4, 0], sizes = [16, 128], strides = [1, 1]} : vector<22x128xf32> to vector<16x128xf32>
      %c18 = arith.constant 18 : index
      %c0_75 = arith.constant 0 : index
      %175 = vector.load %arg5[%c18, %c0_75] : memref<49x128xf32, #tpu.memory_space<vmem>>, vector<1x128xf32>
      %176 = vector.shape_cast %175 : vector<1x128xf32> to vector<128xf32>
      %177 = vector.shape_cast %176 : vector<128xf32> to vector<1x128xf32>
      %178 = vector.broadcast %177 : vector<1x128xf32> to vector<16x128xf32>
      %179 = arith.mulf %174, %178 : vector<16x128xf32>
      %180 = arith.addf %173, %179 : vector<16x128xf32>
      %181 = vector.extract_strided_slice %145 {offsets = [5, 0], sizes = [16, 128], strides = [1, 1]} : vector<22x128xf32> to vector<16x128xf32>
      %c19 = arith.constant 19 : index
      %c0_76 = arith.constant 0 : index
      %182 = vector.load %arg5[%c19, %c0_76] : memref<49x128xf32, #tpu.memory_space<vmem>>, vector<1x128xf32>
      %183 = vector.shape_cast %182 : vector<1x128xf32> to vector<128xf32>
      %184 = vector.shape_cast %183 : vector<128xf32> to vector<1x128xf32>
      %185 = vector.broadcast %184 : vector<1x128xf32> to vector<16x128xf32>
      %186 = arith.mulf %181, %185 : vector<16x128xf32>
      %187 = arith.addf %180, %186 : vector<16x128xf32>
      %188 = vector.extract_strided_slice %145 {offsets = [6, 0], sizes = [16, 128], strides = [1, 1]} : vector<22x128xf32> to vector<16x128xf32>
      %c20 = arith.constant 20 : index
      %c0_77 = arith.constant 0 : index
      %189 = vector.load %arg5[%c20, %c0_77] : memref<49x128xf32, #tpu.memory_space<vmem>>, vector<1x128xf32>
      %190 = vector.shape_cast %189 : vector<1x128xf32> to vector<128xf32>
      %191 = vector.shape_cast %190 : vector<128xf32> to vector<1x128xf32>
      %192 = vector.broadcast %191 : vector<1x128xf32> to vector<16x128xf32>
      %193 = arith.mulf %188, %192 : vector<16x128xf32>
      %194 = arith.addf %187, %193 : vector<16x128xf32>
      %c3_i32 = arith.constant 3 : i32
      %195 = arith.addi %arg9, %c3_i32 : i32
      %196 = arith.index_cast %195 : i32 to index
      %c0_78 = arith.constant 0 : index
      %c0_79 = arith.constant 0 : index
      %197 = vector.load %arg8[%196, %c0_78, %c0_79] : memref<14x22x128xf32, #tpu.memory_space<vmem>>, vector<1x22x128xf32>
      %198 = vector.shape_cast %197 : vector<1x22x128xf32> to vector<22x128xf32>
      %199 = vector.extract_strided_slice %198 {offsets = [0, 0], sizes = [16, 128], strides = [1, 1]} : vector<22x128xf32> to vector<16x128xf32>
      %c21 = arith.constant 21 : index
      %c0_80 = arith.constant 0 : index
      %200 = vector.load %arg5[%c21, %c0_80] : memref<49x128xf32, #tpu.memory_space<vmem>>, vector<1x128xf32>
      %201 = vector.shape_cast %200 : vector<1x128xf32> to vector<128xf32>
      %202 = vector.shape_cast %201 : vector<128xf32> to vector<1x128xf32>
      %203 = vector.broadcast %202 : vector<1x128xf32> to vector<16x128xf32>
      %204 = arith.mulf %199, %203 : vector<16x128xf32>
      %205 = arith.addf %194, %204 : vector<16x128xf32>
      %206 = vector.extract_strided_slice %198 {offsets = [1, 0], sizes = [16, 128], strides = [1, 1]} : vector<22x128xf32> to vector<16x128xf32>
      %c22 = arith.constant 22 : index
      %c0_81 = arith.constant 0 : index
      %207 = vector.load %arg5[%c22, %c0_81] : memref<49x128xf32, #tpu.memory_space<vmem>>, vector<1x128xf32>
      %208 = vector.shape_cast %207 : vector<1x128xf32> to vector<128xf32>
      %209 = vector.shape_cast %208 : vector<128xf32> to vector<1x128xf32>
      %210 = vector.broadcast %209 : vector<1x128xf32> to vector<16x128xf32>
      %211 = arith.mulf %206, %210 : vector<16x128xf32>
      %212 = arith.addf %205, %211 : vector<16x128xf32>
      %213 = vector.extract_strided_slice %198 {offsets = [2, 0], sizes = [16, 128], strides = [1, 1]} : vector<22x128xf32> to vector<16x128xf32>
      %c23 = arith.constant 23 : index
      %c0_82 = arith.constant 0 : index
      %214 = vector.load %arg5[%c23, %c0_82] : memref<49x128xf32, #tpu.memory_space<vmem>>, vector<1x128xf32>
      %215 = vector.shape_cast %214 : vector<1x128xf32> to vector<128xf32>
      %216 = vector.shape_cast %215 : vector<128xf32> to vector<1x128xf32>
      %217 = vector.broadcast %216 : vector<1x128xf32> to vector<16x128xf32>
      %218 = arith.mulf %213, %217 : vector<16x128xf32>
      %219 = arith.addf %212, %218 : vector<16x128xf32>
      %220 = vector.extract_strided_slice %198 {offsets = [3, 0], sizes = [16, 128], strides = [1, 1]} : vector<22x128xf32> to vector<16x128xf32>
      %c24 = arith.constant 24 : index
      %c0_83 = arith.constant 0 : index
      %221 = vector.load %arg5[%c24, %c0_83] : memref<49x128xf32, #tpu.memory_space<vmem>>, vector<1x128xf32>
      %222 = vector.shape_cast %221 : vector<1x128xf32> to vector<128xf32>
      %223 = vector.shape_cast %222 : vector<128xf32> to vector<1x128xf32>
      %224 = vector.broadcast %223 : vector<1x128xf32> to vector<16x128xf32>
      %225 = arith.mulf %220, %224 : vector<16x128xf32>
      %226 = arith.addf %219, %225 : vector<16x128xf32>
      %227 = vector.extract_strided_slice %198 {offsets = [4, 0], sizes = [16, 128], strides = [1, 1]} : vector<22x128xf32> to vector<16x128xf32>
      %c25 = arith.constant 25 : index
      %c0_84 = arith.constant 0 : index
      %228 = vector.load %arg5[%c25, %c0_84] : memref<49x128xf32, #tpu.memory_space<vmem>>, vector<1x128xf32>
      %229 = vector.shape_cast %228 : vector<1x128xf32> to vector<128xf32>
      %230 = vector.shape_cast %229 : vector<128xf32> to vector<1x128xf32>
      %231 = vector.broadcast %230 : vector<1x128xf32> to vector<16x128xf32>
      %232 = arith.mulf %227, %231 : vector<16x128xf32>
      %233 = arith.addf %226, %232 : vector<16x128xf32>
      %234 = vector.extract_strided_slice %198 {offsets = [5, 0], sizes = [16, 128], strides = [1, 1]} : vector<22x128xf32> to vector<16x128xf32>
      %c26 = arith.constant 26 : index
      %c0_85 = arith.constant 0 : index
      %235 = vector.load %arg5[%c26, %c0_85] : memref<49x128xf32, #tpu.memory_space<vmem>>, vector<1x128xf32>
      %236 = vector.shape_cast %235 : vector<1x128xf32> to vector<128xf32>
      %237 = vector.shape_cast %236 : vector<128xf32> to vector<1x128xf32>
      %238 = vector.broadcast %237 : vector<1x128xf32> to vector<16x128xf32>
      %239 = arith.mulf %234, %238 : vector<16x128xf32>
      %240 = arith.addf %233, %239 : vector<16x128xf32>
      %241 = vector.extract_strided_slice %198 {offsets = [6, 0], sizes = [16, 128], strides = [1, 1]} : vector<22x128xf32> to vector<16x128xf32>
      %c27 = arith.constant 27 : index
      %c0_86 = arith.constant 0 : index
      %242 = vector.load %arg5[%c27, %c0_86] : memref<49x128xf32, #tpu.memory_space<vmem>>, vector<1x128xf32>
      %243 = vector.shape_cast %242 : vector<1x128xf32> to vector<128xf32>
      %244 = vector.shape_cast %243 : vector<128xf32> to vector<1x128xf32>
      %245 = vector.broadcast %244 : vector<1x128xf32> to vector<16x128xf32>
      %246 = arith.mulf %241, %245 : vector<16x128xf32>
      %247 = arith.addf %240, %246 : vector<16x128xf32>
      %c4_i32 = arith.constant 4 : i32
      %248 = arith.addi %arg9, %c4_i32 : i32
      %249 = arith.index_cast %248 : i32 to index
      %c0_87 = arith.constant 0 : index
      %c0_88 = arith.constant 0 : index
      %250 = vector.load %arg8[%249, %c0_87, %c0_88] : memref<14x22x128xf32, #tpu.memory_space<vmem>>, vector<1x22x128xf32>
      %251 = vector.shape_cast %250 : vector<1x22x128xf32> to vector<22x128xf32>
      %252 = vector.extract_strided_slice %251 {offsets = [0, 0], sizes = [16, 128], strides = [1, 1]} : vector<22x128xf32> to vector<16x128xf32>
      %c28 = arith.constant 28 : index
      %c0_89 = arith.constant 0 : index
      %253 = vector.load %arg5[%c28, %c0_89] : memref<49x128xf32, #tpu.memory_space<vmem>>, vector<1x128xf32>
      %254 = vector.shape_cast %253 : vector<1x128xf32> to vector<128xf32>
      %255 = vector.shape_cast %254 : vector<128xf32> to vector<1x128xf32>
      %256 = vector.broadcast %255 : vector<1x128xf32> to vector<16x128xf32>
      %257 = arith.mulf %252, %256 : vector<16x128xf32>
      %258 = arith.addf %247, %257 : vector<16x128xf32>
      %259 = vector.extract_strided_slice %251 {offsets = [1, 0], sizes = [16, 128], strides = [1, 1]} : vector<22x128xf32> to vector<16x128xf32>
      %c29 = arith.constant 29 : index
      %c0_90 = arith.constant 0 : index
      %260 = vector.load %arg5[%c29, %c0_90] : memref<49x128xf32, #tpu.memory_space<vmem>>, vector<1x128xf32>
      %261 = vector.shape_cast %260 : vector<1x128xf32> to vector<128xf32>
      %262 = vector.shape_cast %261 : vector<128xf32> to vector<1x128xf32>
      %263 = vector.broadcast %262 : vector<1x128xf32> to vector<16x128xf32>
      %264 = arith.mulf %259, %263 : vector<16x128xf32>
      %265 = arith.addf %258, %264 : vector<16x128xf32>
      %266 = vector.extract_strided_slice %251 {offsets = [2, 0], sizes = [16, 128], strides = [1, 1]} : vector<22x128xf32> to vector<16x128xf32>
      %c30 = arith.constant 30 : index
      %c0_91 = arith.constant 0 : index
      %267 = vector.load %arg5[%c30, %c0_91] : memref<49x128xf32, #tpu.memory_space<vmem>>, vector<1x128xf32>
      %268 = vector.shape_cast %267 : vector<1x128xf32> to vector<128xf32>
      %269 = vector.shape_cast %268 : vector<128xf32> to vector<1x128xf32>
      %270 = vector.broadcast %269 : vector<1x128xf32> to vector<16x128xf32>
      %271 = arith.mulf %266, %270 : vector<16x128xf32>
      %272 = arith.addf %265, %271 : vector<16x128xf32>
      %273 = vector.extract_strided_slice %251 {offsets = [3, 0], sizes = [16, 128], strides = [1, 1]} : vector<22x128xf32> to vector<16x128xf32>
      %c31 = arith.constant 31 : index
      %c0_92 = arith.constant 0 : index
      %274 = vector.load %arg5[%c31, %c0_92] : memref<49x128xf32, #tpu.memory_space<vmem>>, vector<1x128xf32>
      %275 = vector.shape_cast %274 : vector<1x128xf32> to vector<128xf32>
      %276 = vector.shape_cast %275 : vector<128xf32> to vector<1x128xf32>
      %277 = vector.broadcast %276 : vector<1x128xf32> to vector<16x128xf32>
      %278 = arith.mulf %273, %277 : vector<16x128xf32>
      %279 = arith.addf %272, %278 : vector<16x128xf32>
      %280 = vector.extract_strided_slice %251 {offsets = [4, 0], sizes = [16, 128], strides = [1, 1]} : vector<22x128xf32> to vector<16x128xf32>
      %c32 = arith.constant 32 : index
      %c0_93 = arith.constant 0 : index
      %281 = vector.load %arg5[%c32, %c0_93] : memref<49x128xf32, #tpu.memory_space<vmem>>, vector<1x128xf32>
      %282 = vector.shape_cast %281 : vector<1x128xf32> to vector<128xf32>
      %283 = vector.shape_cast %282 : vector<128xf32> to vector<1x128xf32>
      %284 = vector.broadcast %283 : vector<1x128xf32> to vector<16x128xf32>
      %285 = arith.mulf %280, %284 : vector<16x128xf32>
      %286 = arith.addf %279, %285 : vector<16x128xf32>
      %287 = vector.extract_strided_slice %251 {offsets = [5, 0], sizes = [16, 128], strides = [1, 1]} : vector<22x128xf32> to vector<16x128xf32>
      %c33 = arith.constant 33 : index
      %c0_94 = arith.constant 0 : index
      %288 = vector.load %arg5[%c33, %c0_94] : memref<49x128xf32, #tpu.memory_space<vmem>>, vector<1x128xf32>
      %289 = vector.shape_cast %288 : vector<1x128xf32> to vector<128xf32>
      %290 = vector.shape_cast %289 : vector<128xf32> to vector<1x128xf32>
      %291 = vector.broadcast %290 : vector<1x128xf32> to vector<16x128xf32>
      %292 = arith.mulf %287, %291 : vector<16x128xf32>
      %293 = arith.addf %286, %292 : vector<16x128xf32>
      %294 = vector.extract_strided_slice %251 {offsets = [6, 0], sizes = [16, 128], strides = [1, 1]} : vector<22x128xf32> to vector<16x128xf32>
      %c34 = arith.constant 34 : index
      %c0_95 = arith.constant 0 : index
      %295 = vector.load %arg5[%c34, %c0_95] : memref<49x128xf32, #tpu.memory_space<vmem>>, vector<1x128xf32>
      %296 = vector.shape_cast %295 : vector<1x128xf32> to vector<128xf32>
      %297 = vector.shape_cast %296 : vector<128xf32> to vector<1x128xf32>
      %298 = vector.broadcast %297 : vector<1x128xf32> to vector<16x128xf32>
      %299 = arith.mulf %294, %298 : vector<16x128xf32>
      %300 = arith.addf %293, %299 : vector<16x128xf32>
      %c5_i32 = arith.constant 5 : i32
      %301 = arith.addi %arg9, %c5_i32 : i32
      %302 = arith.index_cast %301 : i32 to index
      %c0_96 = arith.constant 0 : index
      %c0_97 = arith.constant 0 : index
      %303 = vector.load %arg8[%302, %c0_96, %c0_97] : memref<14x22x128xf32, #tpu.memory_space<vmem>>, vector<1x22x128xf32>
      %304 = vector.shape_cast %303 : vector<1x22x128xf32> to vector<22x128xf32>
      %305 = vector.extract_strided_slice %304 {offsets = [0, 0], sizes = [16, 128], strides = [1, 1]} : vector<22x128xf32> to vector<16x128xf32>
      %c35 = arith.constant 35 : index
      %c0_98 = arith.constant 0 : index
      %306 = vector.load %arg5[%c35, %c0_98] : memref<49x128xf32, #tpu.memory_space<vmem>>, vector<1x128xf32>
      %307 = vector.shape_cast %306 : vector<1x128xf32> to vector<128xf32>
      %308 = vector.shape_cast %307 : vector<128xf32> to vector<1x128xf32>
      %309 = vector.broadcast %308 : vector<1x128xf32> to vector<16x128xf32>
      %310 = arith.mulf %305, %309 : vector<16x128xf32>
      %311 = arith.addf %300, %310 : vector<16x128xf32>
      %312 = vector.extract_strided_slice %304 {offsets = [1, 0], sizes = [16, 128], strides = [1, 1]} : vector<22x128xf32> to vector<16x128xf32>
      %c36 = arith.constant 36 : index
      %c0_99 = arith.constant 0 : index
      %313 = vector.load %arg5[%c36, %c0_99] : memref<49x128xf32, #tpu.memory_space<vmem>>, vector<1x128xf32>
      %314 = vector.shape_cast %313 : vector<1x128xf32> to vector<128xf32>
      %315 = vector.shape_cast %314 : vector<128xf32> to vector<1x128xf32>
      %316 = vector.broadcast %315 : vector<1x128xf32> to vector<16x128xf32>
      %317 = arith.mulf %312, %316 : vector<16x128xf32>
      %318 = arith.addf %311, %317 : vector<16x128xf32>
      %319 = vector.extract_strided_slice %304 {offsets = [2, 0], sizes = [16, 128], strides = [1, 1]} : vector<22x128xf32> to vector<16x128xf32>
      %c37 = arith.constant 37 : index
      %c0_100 = arith.constant 0 : index
      %320 = vector.load %arg5[%c37, %c0_100] : memref<49x128xf32, #tpu.memory_space<vmem>>, vector<1x128xf32>
      %321 = vector.shape_cast %320 : vector<1x128xf32> to vector<128xf32>
      %322 = vector.shape_cast %321 : vector<128xf32> to vector<1x128xf32>
      %323 = vector.broadcast %322 : vector<1x128xf32> to vector<16x128xf32>
      %324 = arith.mulf %319, %323 : vector<16x128xf32>
      %325 = arith.addf %318, %324 : vector<16x128xf32>
      %326 = vector.extract_strided_slice %304 {offsets = [3, 0], sizes = [16, 128], strides = [1, 1]} : vector<22x128xf32> to vector<16x128xf32>
      %c38 = arith.constant 38 : index
      %c0_101 = arith.constant 0 : index
      %327 = vector.load %arg5[%c38, %c0_101] : memref<49x128xf32, #tpu.memory_space<vmem>>, vector<1x128xf32>
      %328 = vector.shape_cast %327 : vector<1x128xf32> to vector<128xf32>
      %329 = vector.shape_cast %328 : vector<128xf32> to vector<1x128xf32>
      %330 = vector.broadcast %329 : vector<1x128xf32> to vector<16x128xf32>
      %331 = arith.mulf %326, %330 : vector<16x128xf32>
      %332 = arith.addf %325, %331 : vector<16x128xf32>
      %333 = vector.extract_strided_slice %304 {offsets = [4, 0], sizes = [16, 128], strides = [1, 1]} : vector<22x128xf32> to vector<16x128xf32>
      %c39 = arith.constant 39 : index
      %c0_102 = arith.constant 0 : index
      %334 = vector.load %arg5[%c39, %c0_102] : memref<49x128xf32, #tpu.memory_space<vmem>>, vector<1x128xf32>
      %335 = vector.shape_cast %334 : vector<1x128xf32> to vector<128xf32>
      %336 = vector.shape_cast %335 : vector<128xf32> to vector<1x128xf32>
      %337 = vector.broadcast %336 : vector<1x128xf32> to vector<16x128xf32>
      %338 = arith.mulf %333, %337 : vector<16x128xf32>
      %339 = arith.addf %332, %338 : vector<16x128xf32>
      %340 = vector.extract_strided_slice %304 {offsets = [5, 0], sizes = [16, 128], strides = [1, 1]} : vector<22x128xf32> to vector<16x128xf32>
      %c40 = arith.constant 40 : index
      %c0_103 = arith.constant 0 : index
      %341 = vector.load %arg5[%c40, %c0_103] : memref<49x128xf32, #tpu.memory_space<vmem>>, vector<1x128xf32>
      %342 = vector.shape_cast %341 : vector<1x128xf32> to vector<128xf32>
      %343 = vector.shape_cast %342 : vector<128xf32> to vector<1x128xf32>
      %344 = vector.broadcast %343 : vector<1x128xf32> to vector<16x128xf32>
      %345 = arith.mulf %340, %344 : vector<16x128xf32>
      %346 = arith.addf %339, %345 : vector<16x128xf32>
      %347 = vector.extract_strided_slice %304 {offsets = [6, 0], sizes = [16, 128], strides = [1, 1]} : vector<22x128xf32> to vector<16x128xf32>
      %c41 = arith.constant 41 : index
      %c0_104 = arith.constant 0 : index
      %348 = vector.load %arg5[%c41, %c0_104] : memref<49x128xf32, #tpu.memory_space<vmem>>, vector<1x128xf32>
      %349 = vector.shape_cast %348 : vector<1x128xf32> to vector<128xf32>
      %350 = vector.shape_cast %349 : vector<128xf32> to vector<1x128xf32>
      %351 = vector.broadcast %350 : vector<1x128xf32> to vector<16x128xf32>
      %352 = arith.mulf %347, %351 : vector<16x128xf32>
      %353 = arith.addf %346, %352 : vector<16x128xf32>
      %c6_i32 = arith.constant 6 : i32
      %354 = arith.addi %arg9, %c6_i32 : i32
      %355 = arith.index_cast %354 : i32 to index
      %c0_105 = arith.constant 0 : index
      %c0_106 = arith.constant 0 : index
      %356 = vector.load %arg8[%355, %c0_105, %c0_106] : memref<14x22x128xf32, #tpu.memory_space<vmem>>, vector<1x22x128xf32>
      %357 = vector.shape_cast %356 : vector<1x22x128xf32> to vector<22x128xf32>
      %358 = vector.extract_strided_slice %357 {offsets = [0, 0], sizes = [16, 128], strides = [1, 1]} : vector<22x128xf32> to vector<16x128xf32>
      %c42 = arith.constant 42 : index
      %c0_107 = arith.constant 0 : index
      %359 = vector.load %arg5[%c42, %c0_107] : memref<49x128xf32, #tpu.memory_space<vmem>>, vector<1x128xf32>
      %360 = vector.shape_cast %359 : vector<1x128xf32> to vector<128xf32>
      %361 = vector.shape_cast %360 : vector<128xf32> to vector<1x128xf32>
      %362 = vector.broadcast %361 : vector<1x128xf32> to vector<16x128xf32>
      %363 = arith.mulf %358, %362 : vector<16x128xf32>
      %364 = arith.addf %353, %363 : vector<16x128xf32>
      %365 = vector.extract_strided_slice %357 {offsets = [1, 0], sizes = [16, 128], strides = [1, 1]} : vector<22x128xf32> to vector<16x128xf32>
      %c43 = arith.constant 43 : index
      %c0_108 = arith.constant 0 : index
      %366 = vector.load %arg5[%c43, %c0_108] : memref<49x128xf32, #tpu.memory_space<vmem>>, vector<1x128xf32>
      %367 = vector.shape_cast %366 : vector<1x128xf32> to vector<128xf32>
      %368 = vector.shape_cast %367 : vector<128xf32> to vector<1x128xf32>
      %369 = vector.broadcast %368 : vector<1x128xf32> to vector<16x128xf32>
      %370 = arith.mulf %365, %369 : vector<16x128xf32>
      %371 = arith.addf %364, %370 : vector<16x128xf32>
      %372 = vector.extract_strided_slice %357 {offsets = [2, 0], sizes = [16, 128], strides = [1, 1]} : vector<22x128xf32> to vector<16x128xf32>
      %c44 = arith.constant 44 : index
      %c0_109 = arith.constant 0 : index
      %373 = vector.load %arg5[%c44, %c0_109] : memref<49x128xf32, #tpu.memory_space<vmem>>, vector<1x128xf32>
      %374 = vector.shape_cast %373 : vector<1x128xf32> to vector<128xf32>
      %375 = vector.shape_cast %374 : vector<128xf32> to vector<1x128xf32>
      %376 = vector.broadcast %375 : vector<1x128xf32> to vector<16x128xf32>
      %377 = arith.mulf %372, %376 : vector<16x128xf32>
      %378 = arith.addf %371, %377 : vector<16x128xf32>
      %379 = vector.extract_strided_slice %357 {offsets = [3, 0], sizes = [16, 128], strides = [1, 1]} : vector<22x128xf32> to vector<16x128xf32>
      %c45 = arith.constant 45 : index
      %c0_110 = arith.constant 0 : index
      %380 = vector.load %arg5[%c45, %c0_110] : memref<49x128xf32, #tpu.memory_space<vmem>>, vector<1x128xf32>
      %381 = vector.shape_cast %380 : vector<1x128xf32> to vector<128xf32>
      %382 = vector.shape_cast %381 : vector<128xf32> to vector<1x128xf32>
      %383 = vector.broadcast %382 : vector<1x128xf32> to vector<16x128xf32>
      %384 = arith.mulf %379, %383 : vector<16x128xf32>
      %385 = arith.addf %378, %384 : vector<16x128xf32>
      %386 = vector.extract_strided_slice %357 {offsets = [4, 0], sizes = [16, 128], strides = [1, 1]} : vector<22x128xf32> to vector<16x128xf32>
      %c46 = arith.constant 46 : index
      %c0_111 = arith.constant 0 : index
      %387 = vector.load %arg5[%c46, %c0_111] : memref<49x128xf32, #tpu.memory_space<vmem>>, vector<1x128xf32>
      %388 = vector.shape_cast %387 : vector<1x128xf32> to vector<128xf32>
      %389 = vector.shape_cast %388 : vector<128xf32> to vector<1x128xf32>
      %390 = vector.broadcast %389 : vector<1x128xf32> to vector<16x128xf32>
      %391 = arith.mulf %386, %390 : vector<16x128xf32>
      %392 = arith.addf %385, %391 : vector<16x128xf32>
      %393 = vector.extract_strided_slice %357 {offsets = [5, 0], sizes = [16, 128], strides = [1, 1]} : vector<22x128xf32> to vector<16x128xf32>
      %c47 = arith.constant 47 : index
      %c0_112 = arith.constant 0 : index
      %394 = vector.load %arg5[%c47, %c0_112] : memref<49x128xf32, #tpu.memory_space<vmem>>, vector<1x128xf32>
      %395 = vector.shape_cast %394 : vector<1x128xf32> to vector<128xf32>
      %396 = vector.shape_cast %395 : vector<128xf32> to vector<1x128xf32>
      %397 = vector.broadcast %396 : vector<1x128xf32> to vector<16x128xf32>
      %398 = arith.mulf %393, %397 : vector<16x128xf32>
      %399 = arith.addf %392, %398 : vector<16x128xf32>
      %400 = vector.extract_strided_slice %357 {offsets = [6, 0], sizes = [16, 128], strides = [1, 1]} : vector<22x128xf32> to vector<16x128xf32>
      %c48 = arith.constant 48 : index
      %c0_113 = arith.constant 0 : index
      %401 = vector.load %arg5[%c48, %c0_113] : memref<49x128xf32, #tpu.memory_space<vmem>>, vector<1x128xf32>
      %402 = vector.shape_cast %401 : vector<1x128xf32> to vector<128xf32>
      %403 = vector.shape_cast %402 : vector<128xf32> to vector<1x128xf32>
      %404 = vector.broadcast %403 : vector<1x128xf32> to vector<16x128xf32>
      %405 = arith.mulf %400, %404 : vector<16x128xf32>
      %406 = arith.addf %399, %405 : vector<16x128xf32>
      %c0_114 = arith.constant 0 : index
      %407 = arith.index_cast %arg9 : i32 to index
      %c0_115 = arith.constant 0 : index
      %c0_116 = arith.constant 0 : index
      %408 = vector.load %arg7[%c0_114, %407, %c0_115, %c0_116] : memref<1x8x16x128xf32, #tpu.memory_space<vmem>>, vector<1x1x16x128xf32>
      %409 = vector.shape_cast %408 : vector<1x1x16x128xf32> to vector<16x128xf32>
      %410 = vector.shape_cast %406 : vector<16x128xf32> to vector<1x1x16x128xf32>
      tpu.vector_store %arg7[%c0_114, %407, %c0_115, %c0_116], %410 {strides = array<i32>} : memref<1x8x16x128xf32, #tpu.memory_space<vmem>>, vector<1x1x16x128xf32>,
    }
    %c8_i32_36 = arith.constant 8 : i32
    return
  }
  func.func @transform_0(%arg0: i32, %arg1: i32, %arg2: i32) -> (i32, i32, i32, i32) {
    %c0_i32 = arith.constant 0 : i32
    %c0_i32_0 = arith.constant 0 : i32
    return %arg0, %arg2, %c0_i32, %arg1 : i32, i32, i32, i32
  }
  func.func @transform_1(%arg0: i32, %arg1: i32, %arg2: i32) -> (i32, i32, i32, i32) {
    %c1_i32 = arith.constant 1 : i32
    %0 = arith.addi %arg2, %c1_i32 : i32
    %c0_i32 = arith.constant 0 : i32
    %c0_i32_0 = arith.constant 0 : i32
    return %arg0, %0, %c0_i32, %arg1 : i32, i32, i32, i32
  }
  func.func @transform_2(%arg0: i32, %arg1: i32, %arg2: i32) -> (i32, i32) {
    %c0_i32 = arith.constant 0 : i32
    %c0_i32_0 = arith.constant 0 : i32
    return %c0_i32, %arg1 : i32, i32
  }
  func.func @transform_3(%arg0: i32, %arg1: i32, %arg2: i32) -> (i32, i32) {
    %c0_i32 = arith.constant 0 : i32
    %c0_i32_0 = arith.constant 0 : i32
    return %c0_i32, %arg1 : i32, i32
  }
  func.func @transform_4(%arg0: i32, %arg1: i32, %arg2: i32) -> (i32, i32, i32, i32) {
    %c0_i32 = arith.constant 0 : i32
    %c0_i32_0 = arith.constant 0 : i32
    return %arg0, %arg2, %c0_i32, %arg1 : i32, i32, i32, i32
  }
}

</mosaic_0001>

<llo_original>
// kernel: tpu_custom_call.1
$region0: #{tpu_custom_call.1}
  #allocation0 [shape = 'u32[]', space=smem, size = 0x4, offset = 0x4, fixed_abs, tag = 'smem constant byte address 0x4 - core index']
  #allocation1 [shape = 'u32[144,128]{1,0:T(1,128)}', space=vmem, size = 0x12000, scoped, tag = 'internal scratch']
  #allocation2 [shape = 'f32[14,22,128]{2,1,0:T(8,128)}', space=vmem, size = 0x2a000, scoped, tag = 'scratch operand']
  %s0 = inlined_call_operand.vmem [shape: f32[2,24,22,128], index: 0, kind: input, shape index: {}]
  %s1 = inlined_call_operand.vmem [shape: f32[2,24,22,128], index: 1, kind: input, shape index: {}]
  %s2 = inlined_call_operand.vmem [shape: f32[49,128], index: 2, kind: input, shape index: {}]
  %s3 = inlined_call_operand.vmem [shape: f32[1,128], index: 3, kind: input, shape index: {}]
  %s4 = inlined_call_operand.hbm [shape: f32[2,16,16,128], index: 4, kind: output, shape index: {}]
  %s5 = sld [smem:[#allocation0]]
  $region63: #{tpu_custom_call.1} parent=0
    _
  %s7 = ssub.s32 1, %s5
  %s8 = scalar_select 0, %s7, %s5
  $region1: #{tpu_custom_call.1} parent=0
    #allocation3 [shape = 'u8[131072]{0}', space=vmem, size = 0x20000, scoped, tag = 'output window, operand 0']
    #allocation4 [shape = 's32[2]{0}', space=sflag, size = 0x8, scoped, tag = 'scoped memory for tpu_custom_call.1']
    %9 = vsyncpa [#allocation4], 0
    %s10 = scalar_lea.sflag [#allocation4], 1
    %11 = vsyncpa %s10, 0
    loop: start=0, step=1, limit=6
    $region2: #{tpu_custom_call.1} parent=1 // loop_pre_header
      _
    $region3: #{tpu_custom_call.1} parent=1 // loop_header
      %s13 = sphi 0, %s17
      %p14 = scmp.ge.s32.totalorder %s13, 6
      %s20 = sphi 0, %s39
      %s21 = sphi 0, %s35
      %s22 = sphi 0, %s31
      %s23 = sphi 0, %s20
      %s24 = sphi 0, %s21
      %s25 = sphi 0, %s22
      %s26 = sphi 0, %s23
      %s27 = sphi 0, %s24
      %s28 = sphi 0, %s25
      %s46 = sphi 0, %s48
      %s49 = sphi 0, %s46
      %s50 = sphi 0, %s49
      %s66 = sphi 0, %s50
      %s78 = sphi 0, %s80
      %s81 = sphi 0, %s78
      %s82 = sphi 0, %s81
      %s98 = sphi 0, %s82
      %s104 = sphi 0, %s106
      %s107 = sphi 0, %s104
      %s108 = sphi 0, %s107
      %s124 = sphi 0, %s108
      %s130 = sphi 0, %s132
      %s133 = sphi 0, %s130
      %s134 = sphi 0, %s133
      %s150 = sphi 0, %s134
      %s160 = sphi 0, %s162
      %s163 = sphi 0, %s160
      %s164 = sphi 0, %s163
      %s180 = sphi 0, %s164
    $region4: #{tpu_custom_call.1} parent=1 // loop_header_branch
      %16 = sbr.rel (%p14) target = $region8
    $region5: #{tpu_custom_call.1} parent=1 // loop_body
      %s18 = ssub.s32 %s13, 1
      %s19 = ssub.s32 %s13, 2
      %s29 = sadd.s32 1, %s22
      %p30 = scmp.ge.s32.totalorder %s29, 2
      %s31 = scalar_select %p30, 0, %s29
      %s32 = sadd.s32 1, %s21
      %s33 = scalar_select %p30, %s32, %s21
      %p34 = scmp.ge.s32.totalorder %s33, 1
      %s35 = scalar_select %p34, 0, %s33
      %s36 = sadd.s32 1, %s20
      %s37 = scalar_select %p34, %s36, %s20
      %p38 = scmp.ge.s32.totalorder %s37, 2
      %s39 = scalar_select %p38, 0, %s37
      %s40 = ssub.s32 %s20, %s39
      %s41 = ssub.s32 %s22, %s31
      %s42 = sor.u32 %s40, %s41
      %s43 = ssub.s32 %s21, %s35
      %s44 = sor.u32 %s42, %s43
      %p45 = scmp.eq.s32.totalorder %s44, 0
      %s47 = sadd.s32 %s46, 1
      %s48 = scalar_select %p45, %s46, %s47
      %p51 = pneg %p45
      %p52 = scmp.eq.s32.totalorder %s13, 3
      %p53 = por %p51, %p52
      %p54 = scmp.ne.s32.totalorder %s46, %s49
      %p55 = scmp.eq.s32.totalorder %s13, 0
      %p56 = por %p54, %p55
      %p57 = scmp.ne.s32.totalorder %s46, %s49
      %p58 = scmp.eq.s32.totalorder %s18, 3
      %p59 = por %p57, %p58
      %p60 = scmp.ne.s32.totalorder %s49, %s50
      %p61 = scmp.eq.s32.totalorder %s18, 0
      %p62 = por %p60, %p61
      %p63 = scmp.ne.s32.totalorder %s49, %s50
      %p64 = scmp.eq.s32.totalorder %s19, 3
      %p65 = por %p63, %p64
      %p67 = scmp.ne.s32.totalorder %s50, %s66
      %p68 = scmp.eq.s32.totalorder %s19, 0
      %p69 = por %p67, %p68
      %s70 = sadd.s32 %s22, 1
      %s71 = sadd.s32 %s31, 1
      %s72 = ssub.s32 %s20, %s39
      %s73 = ssub.s32 %s70, %s71
      %s74 = sor.u32 %s72, %s73
      %s75 = ssub.s32 %s21, %s35
      %s76 = sor.u32 %s74, %s75
      %p77 = scmp.eq.s32.totalorder %s76, 0
      %s79 = sadd.s32 %s78, 1
      %s80 = scalar_select %p77, %s78, %s79
      %p83 = pneg %p77
      %p84 = scmp.eq.s32.totalorder %s13, 3
      %p85 = por %p83, %p84
      %p86 = scmp.ne.s32.totalorder %s78, %s81
      %p87 = scmp.eq.s32.totalorder %s13, 0
      %p88 = por %p86, %p87
      %p89 = scmp.ne.s32.totalorder %s78, %s81
      %p90 = scmp.eq.s32.totalorder %s18, 3
      %p91 = por %p89, %p90
      %p92 = scmp.ne.s32.totalorder %s81, %s82
      %p93 = scmp.eq.s32.totalorder %s18, 0
      %p94 = por %p92, %p93
      %p95 = scmp.ne.s32.totalorder %s81, %s82
      %p96 = scmp.eq.s32.totalorder %s19, 3
      %p97 = por %p95, %p96
      %p99 = scmp.ne.s32.totalorder %s82, %s98
      %p100 = scmp.eq.s32.totalorder %s19, 0
      %p101 = por %p99, %p100
      %s102 = ssub.s32 %s21, %s35
      %p103 = scmp.eq.s32.totalorder %s102, 0
      %s105 = sadd.s32 %s104, 1
      %s106 = scalar_select %p103, %s104, %s105
      %p109 = pneg %p103
      %p110 = scmp.eq.s32.totalorder %s13, 3
      %p111 = por %p109, %p110
      %p112 = scmp.ne.s32.totalorder %s104, %s107
      %p113 = scmp.eq.s32.totalorder %s13, 0
      %p114 = por %p112, %p113
      %p115 = scmp.ne.s32.totalorder %s104, %s107
      %p116 = scmp.eq.s32.totalorder %s18, 3
      %p117 = por %p115, %p116
      %p118 = scmp.ne.s32.totalorder %s107, %s108
      %p119 = scmp.eq.s32.totalorder %s18, 0
      %p120 = por %p118, %p119
      %p121 = scmp.ne.s32.totalorder %s107, %s108
      %p122 = scmp.eq.s32.totalorder %s19, 3
      %p123 = por %p121, %p122
      %p125 = scmp.ne.s32.totalorder %s108, %s124
      %p126 = scmp.eq.s32.totalorder %s19, 0
      %p127 = por %p125, %p126
      %s128 = ssub.s32 %s21, %s35
      %p129 = scmp.eq.s32.totalorder %s128, 0
      %s131 = sadd.s32 %s130, 1
      %s132 = scalar_select %p129, %s130, %s131
      %p135 = pneg %p129
      %p136 = scmp.eq.s32.totalorder %s13, 3
      %p137 = por %p135, %p136
      %p138 = scmp.ne.s32.totalorder %s130, %s133
      %p139 = scmp.eq.s32.totalorder %s13, 0
      %p140 = por %p138, %p139
      %p141 = scmp.ne.s32.totalorder %s130, %s133
      %p142 = scmp.eq.s32.totalorder %s18, 3
      %p143 = por %p141, %p142
      %p144 = scmp.ne.s32.totalorder %s133, %s134
      %p145 = scmp.eq.s32.totalorder %s18, 0
      %p146 = por %p144, %p145
      %p147 = scmp.ne.s32.totalorder %s133, %s134
      %p148 = scmp.eq.s32.totalorder %s19, 3
      %p149 = por %p147, %p148
      %p151 = scmp.ne.s32.totalorder %s134, %s150
      %p152 = scmp.eq.s32.totalorder %s19, 0
      %p153 = por %p151, %p152
      %s154 = ssub.s32 %s20, %s39
      %s155 = ssub.s32 %s22, %s31
      %s156 = sor.u32 %s154, %s155
      %s157 = ssub.s32 %s21, %s35
      %s158 = sor.u32 %s156, %s157
      %p159 = scmp.eq.s32.totalorder %s158, 0
      %s161 = sadd.s32 %s160, 1
      %s162 = scalar_select %p159, %s160, %s161
      %p165 = pneg %p159
      %p166 = scmp.eq.s32.totalorder %s13, 3
      %p167 = por %p165, %p166
      %p168 = scmp.ne.s32.totalorder %s160, %s163
      %p169 = scmp.eq.s32.totalorder %s13, 0
      %p170 = por %p168, %p169
      %p171 = scmp.ne.s32.totalorder %s160, %s163
      %p172 = scmp.eq.s32.totalorder %s18, 3
      %p173 = por %p171, %p172
      %p174 = scmp.ne.s32.totalorder %s163, %s164
      %p175 = scmp.eq.s32.totalorder %s18, 0
      %p176 = por %p174, %p175
      %p177 = scmp.ne.s32.totalorder %s163, %s164
      %p178 = scmp.eq.s32.totalorder %s19, 3
      %p179 = por %p177, %p178
      %p181 = scmp.ne.s32.totalorder %s164, %s180
      %p182 = scmp.eq.s32.totalorder %s19, 0
      %p183 = por %p181, %p182
      %p184 = scmp.le.s32.totalorder 1, %s13
      %p185 = scmp.lt.s32.totalorder %s13, 5
      %p186 = pnand %p184, %p185
      %p187 = pneg %p186
      // Predicated region
      $region9: #{tpu_custom_call.1} parent=5 // pred_check
        _
      $region10: #{tpu_custom_call.1} parent=5 // pred_check_branch
        %189 = sbr.rel (%p186) target = $region12
      $region11: #{tpu_custom_call.1} parent=5 // pred_region
        %s190 = ssub.s32 %s13, 1
        // Predicated region
        $region13: #{tpu_custom_call.1} parent=11 // pred_check
          %p191 = pneg %p120
        $region14: #{tpu_custom_call.1} parent=11 // pred_check_branch
          %193 = sbr.rel (%p191) target = $region16
        $region15: #{tpu_custom_call.1} parent=11 // pred_region
          %p194 = scmp.lt.s32.totalorder %s24, 0
          %s195 = scalar_select %p194, %s24, 0
          %s196 = smul.addr %s195, 8
          %s197 = scalar_lea.vmem %s2, %s196
        $region16: #{tpu_custom_call.1} parent=11 // pred_fallthru
          _
        // Predicated region
        $region17: #{tpu_custom_call.1} parent=11 // pred_check
          %p198 = pneg %p146
        $region18: #{tpu_custom_call.1} parent=11 // pred_check_branch
          %200 = sbr.rel (%p198) target = $region20
        $region19: #{tpu_custom_call.1} parent=11 // pred_region
          %p201 = scmp.lt.s32.totalorder %s24, 0
          %s202 = scalar_select %p201, %s24, 0
          %s203 = scalar_lea.vmem %s3, %s202
        $region20: #{tpu_custom_call.1} parent=11 // pred_fallthru
          _
      $region12: #{tpu_custom_call.1} parent=5 // pred_fallthru
        _
      %p204 = scmp.lt.s32.totalorder %s13, 4
      // Predicated region
      $region21: #{tpu_custom_call.1} parent=5 // pred_check
        %p205 = pneg %p204
      $region22: #{tpu_custom_call.1} parent=5 // pred_check_branch
        %207 = sbr.rel (%p205) target = $region24
      $region23: #{tpu_custom_call.1} parent=5 // pred_region
        // Predicated region
        $region25: #{tpu_custom_call.1} parent=23 // pred_check
          %p208 = pneg %p56
        $region26: #{tpu_custom_call.1} parent=23 // pred_check_branch
          %210 = sbr.rel (%p208) target = $region28
        $region27: #{tpu_custom_call.1} parent=23 // pred_region
          %s211 = smul.u32 8, %s22
          %p212 = scmp.lt.s32.totalorder %s20, 1
          %s213 = scalar_select %p212, %s20, 1
          %p214 = scmp.lt.s32.totalorder %s211, 23
          %s215 = scalar_select %p214, %s211, 23
          %p216 = scmp.lt.s32.totalorder %s21, 0
          %s217 = scalar_select %p216, %s21, 0
          %s218 = smul.addr %s215, 3
          %s219 = sadd.s32 %s217, %s218
          %s220 = smul.addr %s213, 72
          %s221 = sadd.s32 %s219, %s220
          %s222 = smul.addr %s221, 8
          %s223 = scalar_lea.vmem %s0, %s222
          %s224 = smul.u32 8, %s22
        $region28: #{tpu_custom_call.1} parent=23 // pred_fallthru
          _
        // Predicated region
        $region29: #{tpu_custom_call.1} parent=23 // pred_check
          %p225 = pneg %p88
        $region30: #{tpu_custom_call.1} parent=23 // pred_check_branch
          %227 = sbr.rel (%p225) target = $region32
        $region31: #{tpu_custom_call.1} parent=23 // pred_region
          %s228 = sadd.s32 %s22, 1
          %s229 = smul.u32 8, %s228
          %p230 = scmp.lt.s32.totalorder %s20, 1
          %s231 = scalar_select %p230, %s20, 1
          %p232 = scmp.lt.s32.totalorder %s229, 23
          %s233 = scalar_select %p232, %s229, 23
          %p234 = scmp.lt.s32.totalorder %s21, 0
          %s235 = scalar_select %p234, %s21, 0
          %s236 = smul.addr %s233, 3
          %s237 = sadd.s32 %s235, %s236
          %s238 = smul.addr %s231, 72
          %s239 = sadd.s32 %s237, %s238
          %s240 = smul.addr %s239, 8
          %s241 = scalar_lea.vmem %s1, %s240
          %s242 = sadd.s32 %s22, 1
          %s243 = smul.u32 8, %s242
        $region32: #{tpu_custom_call.1} parent=23 // pred_fallthru
          _
      $region24: #{tpu_custom_call.1} parent=5 // pred_fallthru
        _
      %p244 = scmp.le.s32.totalorder 1, %s13
      %p245 = scmp.lt.s32.totalorder %s13, 5
      %p246 = pnand %p244, %p245
      %p247 = pneg %p246
      // Predicated region
      $region33: #{tpu_custom_call.1} parent=5 // pred_check
        _
      $region34: #{tpu_custom_call.1} parent=5 // pred_check_branch
        %249 = sbr.rel (%p246) target = $region36
      $region35: #{tpu_custom_call.1} parent=5 // pred_region
        %s250 = ssub.s32 %s13, 1
        %s251 = smul.u32 8, %s25
        %p252 = scmp.lt.s32.totalorder %s23, 1
        %s253 = scalar_select %p252, %s23, 1
        %p254 = scmp.lt.s32.totalorder %s251, 23
        %s255 = scalar_select %p254, %s251, 23
        %p256 = scmp.lt.s32.totalorder %s24, 0
        %s257 = scalar_select %p256, %s24, 0
        %s258 = smul.addr %s255, 3
        %s259 = sadd.s32 %s257, %s258
        %s260 = smul.addr %s253, 72
        %s261 = sadd.s32 %s259, %s260
        %s262 = smul.addr %s261, 8
        %s263 = scalar_lea.vmem %s0, %s262
        %p264 = pneg %p62
        %p265 = pneg %p59
        %s266 = sadd.s32 %s25, 1
        %s267 = smul.u32 8, %s266
        %p268 = scmp.lt.s32.totalorder %s23, 1
        %s269 = scalar_select %p268, %s23, 1
        %p270 = scmp.lt.s32.totalorder %s267, 23
        %s271 = scalar_select %p270, %s267, 23
        %p272 = scmp.lt.s32.totalorder %s24, 0
        %s273 = scalar_select %p272, %s24, 0
        %s274 = smul.addr %s271, 3
        %s275 = sadd.s32 %s273, %s274
        %s276 = smul.addr %s269, 72
        %s277 = sadd.s32 %s275, %s276
        %s278 = smul.addr %s277, 8
        %s279 = scalar_lea.vmem %s1, %s278
        %p280 = pneg %p94
        %p281 = pneg %p91
        %p282 = scmp.lt.s32.totalorder %s24, 0
        %s283 = scalar_select %p282, %s24, 0
        %s284 = smul.addr %s283, 8
        %s285 = scalar_lea.vmem %s2, %s284
        %p286 = pneg %p120
        %p287 = pneg %p117
        %p288 = scmp.lt.s32.totalorder %s24, 0
        %s289 = scalar_select %p288, %s24, 0
        %s290 = scalar_lea.vmem %s3, %s289
        %p291 = pneg %p146
        %p292 = pneg %p143
        %p293 = pneg %p176
        %p294 = pneg %p173
        %s295 = sand.u32 %s163, 1
        %s296 = scalar_lea.sflag [#allocation4], %s295
        %s297 = sand.u32 %s163, 1
        %s298 = smul.addr %s297, 128
        %s299 = scalar_lea.vmem [#allocation3], %s298
        %s300 = smul.u32 8, %s25
        %p301 = scmp.lt.s32.totalorder %s23, 1
        %s302 = scalar_select %p301, %s23, 1
        %p303 = scmp.lt.s32.totalorder %s300, 23
        %s304 = scalar_select %p303, %s300, 23
        %p305 = scmp.lt.s32.totalorder %s24, 0
        %s306 = scalar_select %p305, %s24, 0
        %s307 = smul.addr %s304, 3
        %s308 = sadd.s32 %s306, %s307
        %s309 = smul.addr %s302, 72
        %s310 = sadd.s32 %s308, %s309
        %s311 = smul.addr %s310, 8
        %s312 = scalar_lea.vmem %s0, %s311
        %s313 = smul.u32 8, %s25
        %s314 = sadd.s32 %s25, 1
        %s315 = smul.u32 8, %s314
        %p316 = scmp.lt.s32.totalorder %s23, 1
        %s317 = scalar_select %p316, %s23, 1
        %p318 = scmp.lt.s32.totalorder %s315, 23
        %s319 = scalar_select %p318, %s315, 23
        %p320 = scmp.lt.s32.totalorder %s24, 0
        %s321 = scalar_select %p320, %s24, 0
        %s322 = smul.addr %s319, 3
        %s323 = sadd.s32 %s321, %s322
        %s324 = smul.addr %s317, 72
        %s325 = sadd.s32 %s323, %s324
        %s326 = smul.addr %s325, 8
        %s327 = scalar_lea.vmem %s1, %s326
        %s328 = sadd.s32 %s25, 1
        %s329 = smul.u32 8, %s328
        %p330 = scmp.lt.s32.totalorder %s24, 0
        %s331 = scalar_select %p330, %s24, 0
        %s332 = smul.addr %s331, 8
        %s333 = scalar_lea.vmem %s2, %s332
        %p334 = scmp.lt.s32.totalorder %s24, 0
        %s335 = scalar_select %p334, %s24, 0
        %s336 = scalar_lea.vmem %s3, %s335
        %s337 = smul.u32 8, %s25
        loop: start=0, step=1, limit=8
        $region37: #{tpu_custom_call.1} parent=35 // loop_pre_header
          _
        $region38: #{tpu_custom_call.1} parent=35 // loop_header
          %s339 = sphi 0, %s343
          %p340 = scmp.ge.s32.totalorder %s339, 8
        $region39: #{tpu_custom_call.1} parent=35 // loop_header_branch
          %342 = sbr.rel (%p340) target = $region43
        $region40: #{tpu_custom_call.1} parent=35 // loop_body
          %s344 = smul.u32 %s339, 24
          %s345 = scalar_lea.vmem %s312, %s344
          %v346 = vld [vmem:[%s345] sm:$0xff]
          %v347 = vld [vmem:[%s345 + $0x8] sm:$0xff]
          %v348 = vld [vmem:[%s345 + $0x10] sm:$0x3f]
          %s349 = scalar_lea.vmem [#allocation2], %s344
          %350 = vst [vmem:[%s349] sm:$0xff] %v346
          %351 = vst [vmem:[%s349 + $0x8] sm:$0xff] %v347
          %352 = vst [vmem:[%s349 + $0x10] sm:$0x3f] %v348
        $region41: #{tpu_custom_call.1} parent=35 // loop_footer
          %s343 = sadd.s32 1, %s339
        $region42: #{tpu_custom_call.1} parent=35 // loop_footer_branch
          %338 = sbr.rel target = $region38
        $region43: #{tpu_custom_call.1} parent=35 // loop_exit
          _
        %v353 = vld [vmem:[%s327] sm:$0xff]
        %v354 = vld [vmem:[%s327 + $0x8] sm:$0xff]
        %v355 = vld [vmem:[%s327 + $0x10] sm:$0x3f]
        %s356 = scalar_lea.vmem [#allocation2], 192
        %357 = vst [vmem:[%s356] sm:$0xff] %v353
        %358 = vst [vmem:[%s356 + $0x8] sm:$0xff] %v354
        %359 = vst [vmem:[%s356 + $0x10] sm:$0x3f] %v355
        %s360 = scalar_lea.vmem %s327, 24
        %v361 = vld [vmem:[%s360] sm:$0xff]
        %v362 = vld [vmem:[%s360 + $0x8] sm:$0xff]
        %v363 = vld [vmem:[%s360 + $0x10] sm:$0x3f]
        %s364 = scalar_lea.vmem [#allocation2], 216
        %365 = vst [vmem:[%s364] sm:$0xff] %v361
        %366 = vst [vmem:[%s364 + $0x8] sm:$0xff] %v362
        %367 = vst [vmem:[%s364 + $0x10] sm:$0x3f] %v363
        %s368 = scalar_lea.vmem %s327, 48
        %v369 = vld [vmem:[%s368] sm:$0xff]
        %v370 = vld [vmem:[%s368 + $0x8] sm:$0xff]
        %v371 = vld [vmem:[%s368 + $0x10] sm:$0x3f]
        %s372 = scalar_lea.vmem [#allocation2], 240
        %373 = vst [vmem:[%s372] sm:$0xff] %v369
        %374 = vst [vmem:[%s372 + $0x8] sm:$0xff] %v370
        %375 = vst [vmem:[%s372 + $0x10] sm:$0x3f] %v371
        %s376 = scalar_lea.vmem %s327, 72
        %v377 = vld [vmem:[%s376] sm:$0xff]
        %v378 = vld [vmem:[%s376 + $0x8] sm:$0xff]
        %v379 = vld [vmem:[%s376 + $0x10] sm:$0x3f]
        %s380 = scalar_lea.vmem [#allocation2], 264
        %381 = vst [vmem:[%s380] sm:$0xff] %v377
        %382 = vst [vmem:[%s380 + $0x8] sm:$0xff] %v378
        %383 = vst [vmem:[%s380 + $0x10] sm:$0x3f] %v379
        %s384 = scalar_lea.vmem %s327, 96
        %v385 = vld [vmem:[%s384] sm:$0xff]
        %v386 = vld [vmem:[%s384 + $0x8] sm:$0xff]
        %v387 = vld [vmem:[%s384 + $0x10] sm:$0x3f]
        %s388 = scalar_lea.vmem [#allocation2], 288
        %389 = vst [vmem:[%s388] sm:$0xff] %v385
        %390 = vst [vmem:[%s388 + $0x8] sm:$0xff] %v386
        %391 = vst [vmem:[%s388 + $0x10] sm:$0x3f] %v387
        %s392 = scalar_lea.vmem %s327, 120
        %v393 = vld [vmem:[%s392] sm:$0xff]
        %v394 = vld [vmem:[%s392 + $0x8] sm:$0xff]
        %v395 = vld [vmem:[%s392 + $0x10] sm:$0x3f]
        %s396 = scalar_lea.vmem [#allocation2], 312
        %397 = vst [vmem:[%s396] sm:$0xff] %v393
        %398 = vst [vmem:[%s396 + $0x8] sm:$0xff] %v394
        %399 = vst [vmem:[%s396 + $0x10] sm:$0x3f] %v395
        %v400 = vld [vmem:[%s336] sm:$0x1]
        loop: start=0, step=1, limit=8
        $region44: #{tpu_custom_call.1} parent=35 // loop_pre_header
          _
        $region45: #{tpu_custom_call.1} parent=35 // loop_header
          %s402 = sphi 0, %s406
          %p403 = scmp.ge.s32.totalorder %s402, 8
        $region46: #{tpu_custom_call.1} parent=35 // loop_header_branch
          %405 = sbr.rel (%p403) target = $region50
        $region47: #{tpu_custom_call.1} parent=35 // loop_body
          %v408 = vlaneseq
          %v409 = vshrl.u32 %v408, 7
          %v410 = vsub.s32 0, %v409
          %v411 = vrot.slane %v400, %v410
          %s413 = smul.u32 %s402, 24
          %s414 = scalar_lea.vmem [#allocation2], %s413
          %v415 = vld [vmem:[%s414] sm:$0xff]
          %v416 = vld [vmem:[%s414 + $0x8] sm:$0xff]
          %v417 = vld [vmem:[%s414 + $0x10] sm:$0x3f]
          %v418 = vld [vmem:[%s333] sm:$0x1]
          %v419 = vlaneseq
          %v420 = vshrl.u32 %v419, 7
          %v421 = vsub.s32 0, %v420
          %v422 = vrot.slane %v418, %v421
          %v423 = vmul.f32 %v415, %v422
          %v424 = vmul.f32 %v416, %v422
          %v425 = vadd.f32 %v411, %v423
          %v426 = vadd.f32 %v411, %v424
          %v427 = vld [vmem:[%s333 + $0x1] sm:$0x1]
          %v428 = vlaneseq
          %v429 = vshrl.u32 %v428, 7
          %v430 = vsub.s32 0, %v429
          %v431 = vrot.slane %v427, %v430
          %v432 = vmul.f32 %v415, %v431
          %v433 = vmul.f32 %v416, %v431
          %v434 = vmul.f32 %v417, %v431
          %vm438 = vcmask 1046528
          %v439 = vrot.slane %v432, 1
          %v440 = vrot.slane %v433, 1
          %v441 = vsel %vm438, %v439, %v440
          %v442 = vrot.slane %v434, 1
          %v443 = vsel %vm438, %v440, %v442
          %v446 = vadd.f32 %v425, %v441
          %v447 = vadd.f32 %v426, %v443
          %v448 = vld [vmem:[%s333 + $0x2] sm:$0x1]
          %v449 = vlaneseq
          %v450 = vshrl.u32 %v449, 7
          %v451 = vsub.s32 0, %v450
          %v452 = vrot.slane %v448, %v451
          %v453 = vmul.f32 %v415, %v452
          %v454 = vmul.f32 %v416, %v452
          %v455 = vmul.f32 %v417, %v452
          %vm459 = vcmask 1045504
          %v460 = vrot.slane %v453, 2
          %v461 = vrot.slane %v454, 2
          %v462 = vsel %vm459, %v460, %v461
          %v463 = vrot.slane %v455, 2
          %v464 = vsel %vm459, %v461, %v463
          %v467 = vadd.f32 %v446, %v462
          %v468 = vadd.f32 %v447, %v464
          %v469 = vld [vmem:[%s333 + $0x3] sm:$0x1]
          %v470 = vlaneseq
          %v471 = vshrl.u32 %v470, 7
          %v472 = vsub.s32 0, %v471
          %v473 = vrot.slane %v469, %v472
          %v474 = vmul.f32 %v415, %v473
          %v475 = vmul.f32 %v416, %v473
          %v476 = vmul.f32 %v417, %v473
          %vm480 = vcmask 1044480
          %v481 = vrot.slane %v474, 3
          %v482 = vrot.slane %v475, 3
          %v483 = vsel %vm480, %v481, %v482
          %v484 = vrot.slane %v476, 3
          %v485 = vsel %vm480, %v482, %v484
          %v488 = vadd.f32 %v467, %v483
          %v489 = vadd.f32 %v468, %v485
          %v490 = vld [vmem:[%s333 + $0x4] sm:$0x1]
          %v491 = vlaneseq
          %v492 = vshrl.u32 %v491, 7
          %v493 = vsub.s32 0, %v492
          %v494 = vrot.slane %v490, %v493
          %v495 = vmul.f32 %v415, %v494
          %v496 = vmul.f32 %v416, %v494
          %v497 = vmul.f32 %v417, %v494
          %vm501 = vcmask 1043456
          %v502 = vrot.slane %v495, 4
          %v503 = vrot.slane %v496, 4
          %v504 = vsel %vm501, %v502, %v503
          %v505 = vrot.slane %v497, 4
          %v506 = vsel %vm501, %v503, %v505
          %v509 = vadd.f32 %v488, %v504
          %v510 = vadd.f32 %v489, %v506
          %v511 = vld [vmem:[%s333 + $0x5] sm:$0x1]
          %v512 = vlaneseq
          %v513 = vshrl.u32 %v512, 7
          %v514 = vsub.s32 0, %v513
          %v515 = vrot.slane %v511, %v514
          %v516 = vmul.f32 %v415, %v515
          %v517 = vmul.f32 %v416, %v515
          %v518 = vmul.f32 %v417, %v515
          %vm522 = vcmask 1042432
          %v523 = vrot.slane %v516, 5
          %v524 = vrot.slane %v517, 5
          %v525 = vsel %vm522, %v523, %v524
          %v526 = vrot.slane %v518, 5
          %v527 = vsel %vm522, %v524, %v526
          %v530 = vadd.f32 %v509, %v525
          %v531 = vadd.f32 %v510, %v527
          %v532 = vld [vmem:[%s333 + $0x6] sm:$0x1]
          %v533 = vlaneseq
          %v534 = vshrl.u32 %v533, 7
          %v535 = vsub.s32 0, %v534
          %v536 = vrot.slane %v532, %v535
          %v537 = vmul.f32 %v415, %v536
          %v538 = vmul.f32 %v416, %v536
          %v539 = vmul.f32 %v417, %v536
          %vm543 = vcmask 1041408
          %v544 = vrot.slane %v537, 6
          %v545 = vrot.slane %v538, 6
          %v546 = vsel %vm543, %v544, %v545
          %v547 = vrot.slane %v539, 6
          %v548 = vsel %vm543, %v545, %v547
          %v551 = vadd.f32 %v530, %v546
          %v552 = vadd.f32 %v531, %v548
          %s553 = sadd.s32 %s402, 1
          %s554 = smul.u32 %s553, 24
          %s555 = scalar_lea.vmem [#allocation2], %s554
          %v556 = vld [vmem:[%s555] sm:$0xff]
          %v557 = vld [vmem:[%s555 + $0x8] sm:$0xff]
          %v558 = vld [vmem:[%s555 + $0x10] sm:$0x3f]
          %v559 = vld [vmem:[%s333 + $0x7] sm:$0x1]
          %v560 = vlaneseq
          %v561 = vshrl.u32 %v560, 7
          %v562 = vsub.s32 0, %v561
          %v563 = vrot.slane %v559, %v562
          %v564 = vmul.f32 %v556, %v563
          %v565 = vmul.f32 %v557, %v563
          %v566 = vadd.f32 %v551, %v564
          %v567 = vadd.f32 %v552, %v565
          %v568 = vld [vmem:[%s333 + $0x8] sm:$0x1]
          %v569 = vlaneseq
          %v570 = vshrl.u32 %v569, 7
          %v571 = vsub.s32 0, %v570
          %v572 = vrot.slane %v568, %v571
          %v573 = vmul.f32 %v556, %v572
          %v574 = vmul.f32 %v557, %v572
          %v575 = vmul.f32 %v558, %v572
          %v579 = vrot.slane %v573, 1
          %v580 = vrot.slane %v574, 1
          %v581 = vsel %vm438, %v579, %v580
          %v582 = vrot.slane %v575, 1
          %v583 = vsel %vm438, %v580, %v582
          %v586 = vadd.f32 %v566, %v581
          %v587 = vadd.f32 %v567, %v583
          %v588 = vld [vmem:[%s333 + $0x9] sm:$0x1]
          %v589 = vlaneseq
          %v590 = vshrl.u32 %v589, 7
          %v591 = vsub.s32 0, %v590
          %v592 = vrot.slane %v588, %v591
          %v593 = vmul.f32 %v556, %v592
          %v594 = vmul.f32 %v557, %v592
          %v595 = vmul.f32 %v558, %v592
          %v599 = vrot.slane %v593, 2
          %v600 = vrot.slane %v594, 2
          %v601 = vsel %vm459, %v599, %v600
          %v602 = vrot.slane %v595, 2
          %v603 = vsel %vm459, %v600, %v602
          %v606 = vadd.f32 %v586, %v601
          %v607 = vadd.f32 %v587, %v603
          %v608 = vld [vmem:[%s333 + $0xa] sm:$0x1]
          %v609 = vlaneseq
          %v610 = vshrl.u32 %v609, 7
          %v611 = vsub.s32 0, %v610
          %v612 = vrot.slane %v608, %v611
          %v613 = vmul.f32 %v556, %v612
          %v614 = vmul.f32 %v557, %v612
          %v615 = vmul.f32 %v558, %v612
          %v619 = vrot.slane %v613, 3
          %v620 = vrot.slane %v614, 3
          %v621 = vsel %vm480, %v619, %v620
          %v622 = vrot.slane %v615, 3
          %v623 = vsel %vm480, %v620, %v622
          %v626 = vadd.f32 %v606, %v621
          %v627 = vadd.f32 %v607, %v623
          %v628 = vld [vmem:[%s333 + $0xb] sm:$0x1]
          %v629 = vlaneseq
          %v630 = vshrl.u32 %v629, 7
          %v631 = vsub.s32 0, %v630
          %v632 = vrot.slane %v628, %v631
          %v633 = vmul.f32 %v556, %v632
          %v634 = vmul.f32 %v557, %v632
          %v635 = vmul.f32 %v558, %v632
          %v639 = vrot.slane %v633, 4
          %v640 = vrot.slane %v634, 4
          %v641 = vsel %vm501, %v639, %v640
          %v642 = vrot.slane %v635, 4
          %v643 = vsel %vm501, %v640, %v642
          %v646 = vadd.f32 %v626, %v641
          %v647 = vadd.f32 %v627, %v643
          %v648 = vld [vmem:[%s333 + $0xc] sm:$0x1]
          %v649 = vlaneseq
          %v650 = vshrl.u32 %v649, 7
          %v651 = vsub.s32 0, %v650
          %v652 = vrot.slane %v648, %v651
          %v653 = vmul.f32 %v556, %v652
          %v654 = vmul.f32 %v557, %v652
          %v655 = vmul.f32 %v558, %v652
          %v659 = vrot.slane %v653, 5
          %v660 = vrot.slane %v654, 5
          %v661 = vsel %vm522, %v659, %v660
          %v662 = vrot.slane %v655, 5
          %v663 = vsel %vm522, %v660, %v662
          %v666 = vadd.f32 %v646, %v661
          %v667 = vadd.f32 %v647, %v663
          %v668 = vld [vmem:[%s333 + $0xd] sm:$0x1]
          %v669 = vlaneseq
          %v670 = vshrl.u32 %v669, 7
          %v671 = vsub.s32 0, %v670
          %v672 = vrot.slane %v668, %v671
          %v673 = vmul.f32 %v556, %v672
          %v674 = vmul.f32 %v557, %v672
          %v675 = vmul.f32 %v558, %v672
          %v679 = vrot.slane %v673, 6
          %v680 = vrot.slane %v674, 6
          %v681 = vsel %vm543, %v679, %v680
          %v682 = vrot.slane %v675, 6
          %v683 = vsel %vm543, %v680, %v682
          %v686 = vadd.f32 %v666, %v681
          %v687 = vadd.f32 %v667, %v683
          %s688 = sadd.s32 %s402, 2
          %s689 = smul.u32 %s688, 24
          %s690 = scalar_lea.vmem [#allocation2], %s689
          %v691 = vld [vmem:[%s690] sm:$0xff]
          %v692 = vld [vmem:[%s690 + $0x8] sm:$0xff]
          %v693 = vld [vmem:[%s690 + $0x10] sm:$0x3f]
          %v694 = vld [vmem:[%s333 + $0xe] sm:$0x1]
          %v695 = vlaneseq
          %v696 = vshrl.u32 %v695, 7
          %v697 = vsub.s32 0, %v696
          %v698 = vrot.slane %v694, %v697
          %v699 = vmul.f32 %v691, %v698
          %v700 = vmul.f32 %v692, %v698
          %v701 = vadd.f32 %v686, %v699
          %v702 = vadd.f32 %v687, %v700
          %v703 = vld [vmem:[%s333 + $0xf] sm:$0x1]
          %v704 = vlaneseq
          %v705 = vshrl.u32 %v704, 7
          %v706 = vsub.s32 0, %v705
          %v707 = vrot.slane %v703, %v706
          %v708 = vmul.f32 %v691, %v707
          %v709 = vmul.f32 %v692, %v707
          %v710 = vmul.f32 %v693, %v707
          %v714 = vrot.slane %v708, 1
          %v715 = vrot.slane %v709, 1
          %v716 = vsel %vm438, %v714, %v715
          %v717 = vrot.slane %v710, 1
          %v718 = vsel %vm438, %v715, %v717
          %v721 = vadd.f32 %v701, %v716
          %v722 = vadd.f32 %v702, %v718
          %v723 = vld [vmem:[%s333 + $0x10] sm:$0x1]
          %v724 = vlaneseq
          %v725 = vshrl.u32 %v724, 7
          %v726 = vsub.s32 0, %v725
          %v727 = vrot.slane %v723, %v726
          %v728 = vmul.f32 %v691, %v727
          %v729 = vmul.f32 %v692, %v727
          %v730 = vmul.f32 %v693, %v727
          %v734 = vrot.slane %v728, 2
          %v735 = vrot.slane %v729, 2
          %v736 = vsel %vm459, %v734, %v735
          %v737 = vrot.slane %v730, 2
          %v738 = vsel %vm459, %v735, %v737
          %v741 = vadd.f32 %v721, %v736
          %v742 = vadd.f32 %v722, %v738
          %v743 = vld [vmem:[%s333 + $0x11] sm:$0x1]
          %v744 = vlaneseq
          %v745 = vshrl.u32 %v744, 7
          %v746 = vsub.s32 0, %v745
          %v747 = vrot.slane %v743, %v746
          %v748 = vmul.f32 %v691, %v747
          %v749 = vmul.f32 %v692, %v747
          %v750 = vmul.f32 %v693, %v747
          %v754 = vrot.slane %v748, 3
          %v755 = vrot.slane %v749, 3
          %v756 = vsel %vm480, %v754, %v755
          %v757 = vrot.slane %v750, 3
          %v758 = vsel %vm480, %v755, %v757
          %v761 = vadd.f32 %v741, %v756
          %v762 = vadd.f32 %v742, %v758
          %v763 = vld [vmem:[%s333 + $0x12] sm:$0x1]
          %v764 = vlaneseq
          %v765 = vshrl.u32 %v764, 7
          %v766 = vsub.s32 0, %v765
          %v767 = vrot.slane %v763, %v766
          %v768 = vmul.f32 %v691, %v767
          %v769 = vmul.f32 %v692, %v767
          %v770 = vmul.f32 %v693, %v767
          %v774 = vrot.slane %v768, 4
          %v775 = vrot.slane %v769, 4
          %v776 = vsel %vm501, %v774, %v775
          %v777 = vrot.slane %v770, 4
          %v778 = vsel %vm501, %v775, %v777
          %v781 = vadd.f32 %v761, %v776
          %v782 = vadd.f32 %v762, %v778
          %v783 = vld [vmem:[%s333 + $0x13] sm:$0x1]
          %v784 = vlaneseq
          %v785 = vshrl.u32 %v784, 7
          %v786 = vsub.s32 0, %v785
          %v787 = vrot.slane %v783, %v786
          %v788 = vmul.f32 %v691, %v787
          %v789 = vmul.f32 %v692, %v787
          %v790 = vmul.f32 %v693, %v787
          %v794 = vrot.slane %v788, 5
          %v795 = vrot.slane %v789, 5
          %v796 = vsel %vm522, %v794, %v795
          %v797 = vrot.slane %v790, 5
          %v798 = vsel %vm522, %v795, %v797
          %v801 = vadd.f32 %v781, %v796
          %v802 = vadd.f32 %v782, %v798
          %v803 = vld [vmem:[%s333 + $0x14] sm:$0x1]
          %v804 = vlaneseq
          %v805 = vshrl.u32 %v804, 7
          %v806 = vsub.s32 0, %v805
          %v807 = vrot.slane %v803, %v806
          %v808 = vmul.f32 %v691, %v807
          %v809 = vmul.f32 %v692, %v807
          %v810 = vmul.f32 %v693, %v807
          %v814 = vrot.slane %v808, 6
          %v815 = vrot.slane %v809, 6
          %v816 = vsel %vm543, %v814, %v815
          %v817 = vrot.slane %v810, 6
          %v818 = vsel %vm543, %v815, %v817
          %v821 = vadd.f32 %v801, %v816
          %v822 = vadd.f32 %v802, %v818
          %s823 = sadd.s32 %s402, 3
          %s824 = smul.u32 %s823, 24
          %s825 = scalar_lea.vmem [#allocation2], %s824
          %v826 = vld [vmem:[%s825] sm:$0xff]
          %v827 = vld [vmem:[%s825 + $0x8] sm:$0xff]
          %v828 = vld [vmem:[%s825 + $0x10] sm:$0x3f]
          %v829 = vld [vmem:[%s333 + $0x15] sm:$0x1]
          %v830 = vlaneseq
          %v831 = vshrl.u32 %v830, 7
          %v832 = vsub.s32 0, %v831
          %v833 = vrot.slane %v829, %v832
          %v834 = vmul.f32 %v826, %v833
          %v835 = vmul.f32 %v827, %v833
          %v836 = vadd.f32 %v821, %v834
          %v837 = vadd.f32 %v822, %v835
          %v838 = vld [vmem:[%s333 + $0x16] sm:$0x1]
          %v839 = vlaneseq
          %v840 = vshrl.u32 %v839, 7
          %v841 = vsub.s32 0, %v840
          %v842 = vrot.slane %v838, %v841
          %v843 = vmul.f32 %v826, %v842
          %v844 = vmul.f32 %v827, %v842
          %v845 = vmul.f32 %v828, %v842
          %v849 = vrot.slane %v843, 1
          %v850 = vrot.slane %v844, 1
          %v851 = vsel %vm438, %v849, %v850
          %v852 = vrot.slane %v845, 1
          %v853 = vsel %vm438, %v850, %v852
          %v856 = vadd.f32 %v836, %v851
          %v857 = vadd.f32 %v837, %v853
          %v858 = vld [vmem:[%s333 + $0x17] sm:$0x1]
          %v859 = vlaneseq
          %v860 = vshrl.u32 %v859, 7
          %v861 = vsub.s32 0, %v860
          %v862 = vrot.slane %v858, %v861
          %v863 = vmul.f32 %v826, %v862
          %v864 = vmul.f32 %v827, %v862
          %v865 = vmul.f32 %v828, %v862
          %v869 = vrot.slane %v863, 2
          %v870 = vrot.slane %v864, 2
          %v871 = vsel %vm459, %v869, %v870
          %v872 = vrot.slane %v865, 2
          %v873 = vsel %vm459, %v870, %v872
          %v876 = vadd.f32 %v856, %v871
          %v877 = vadd.f32 %v857, %v873
          %v878 = vld [vmem:[%s333 + $0x18] sm:$0x1]
          %v879 = vlaneseq
          %v880 = vshrl.u32 %v879, 7
          %v881 = vsub.s32 0, %v880
          %v882 = vrot.slane %v878, %v881
          %v883 = vmul.f32 %v826, %v882
          %v884 = vmul.f32 %v827, %v882
          %v885 = vmul.f32 %v828, %v882
          %v889 = vrot.slane %v883, 3
          %v890 = vrot.slane %v884, 3
          %v891 = vsel %vm480, %v889, %v890
          %v892 = vrot.slane %v885, 3
          %v893 = vsel %vm480, %v890, %v892
          %v896 = vadd.f32 %v876, %v891
          %v897 = vadd.f32 %v877, %v893
          %v898 = vld [vmem:[%s333 + $0x19] sm:$0x1]
          %v899 = vlaneseq
          %v900 = vshrl.u32 %v899, 7
          %v901 = vsub.s32 0, %v900
          %v902 = vrot.slane %v898, %v901
          %v903 = vmul.f32 %v826, %v902
          %v904 = vmul.f32 %v827, %v902
          %v905 = vmul.f32 %v828, %v902
          %v909 = vrot.slane %v903, 4
          %v910 = vrot.slane %v904, 4
          %v911 = vsel %vm501, %v909, %v910
          %v912 = vrot.slane %v905, 4
          %v913 = vsel %vm501, %v910, %v912
          %v916 = vadd.f32 %v896, %v911
          %v917 = vadd.f32 %v897, %v913
          %v918 = vld [vmem:[%s333 + $0x1a] sm:$0x1]
          %v919 = vlaneseq
          %v920 = vshrl.u32 %v919, 7
          %v921 = vsub.s32 0, %v920
          %v922 = vrot.slane %v918, %v921
          %v923 = vmul.f32 %v826, %v922
          %v924 = vmul.f32 %v827, %v922
          %v925 = vmul.f32 %v828, %v922
          %v929 = vrot.slane %v923, 5
          %v930 = vrot.slane %v924, 5
          %v931 = vsel %vm522, %v929, %v930
          %v932 = vrot.slane %v925, 5
          %v933 = vsel %vm522, %v930, %v932
          %v936 = vadd.f32 %v916, %v931
          %v937 = vadd.f32 %v917, %v933
          %v938 = vld [vmem:[%s333 + $0x1b] sm:$0x1]
          %v939 = vlaneseq
          %v940 = vshrl.u32 %v939, 7
          %v941 = vsub.s32 0, %v940
          %v942 = vrot.slane %v938, %v941
          %v943 = vmul.f32 %v826, %v942
          %v944 = vmul.f32 %v827, %v942
          %v945 = vmul.f32 %v828, %v942
          %v949 = vrot.slane %v943, 6
          %v950 = vrot.slane %v944, 6
          %v951 = vsel %vm543, %v949, %v950
          %v952 = vrot.slane %v945, 6
          %v953 = vsel %vm543, %v950, %v952
          %v956 = vadd.f32 %v936, %v951
          %v957 = vadd.f32 %v937, %v953
          %s958 = sadd.s32 %s402, 4
          %s959 = smul.u32 %s958, 24
          %s960 = scalar_lea.vmem [#allocation2], %s959
          %v961 = vld [vmem:[%s960] sm:$0xff]
          %v962 = vld [vmem:[%s960 + $0x8] sm:$0xff]
          %v963 = vld [vmem:[%s960 + $0x10] sm:$0x3f]
          %v964 = vld [vmem:[%s333 + $0x1c] sm:$0x1]
          %v965 = vlaneseq
          %v966 = vshrl.u32 %v965, 7
          %v967 = vsub.s32 0, %v966
          %v968 = vrot.slane %v964, %v967
          %v969 = vmul.f32 %v961, %v968
          %v970 = vmul.f32 %v962, %v968
          %v971 = vadd.f32 %v956, %v969
          %v972 = vadd.f32 %v957, %v970
          %v973 = vld [vmem:[%s333 + $0x1d] sm:$0x1]
          %v974 = vlaneseq
          %v975 = vshrl.u32 %v974, 7
          %v976 = vsub.s32 0, %v975
          %v977 = vrot.slane %v973, %v976
          %v978 = vmul.f32 %v961, %v977
          %v979 = vmul.f32 %v962, %v977
          %v980 = vmul.f32 %v963, %v977
          %v984 = vrot.slane %v978, 1
          %v985 = vrot.slane %v979, 1
          %v986 = vsel %vm438, %v984, %v985
          %v987 = vrot.slane %v980, 1
          %v988 = vsel %vm438, %v985, %v987
          %v991 = vadd.f32 %v971, %v986
          %v992 = vadd.f32 %v972, %v988
          %v993 = vld [vmem:[%s333 + $0x1e] sm:$0x1]
          %v994 = vlaneseq
          %v995 = vshrl.u32 %v994, 7
          %v996 = vsub.s32 0, %v995
          %v997 = vrot.slane %v993, %v996
          %v998 = vmul.f32 %v961, %v997
          %v999 = vmul.f32 %v962, %v997
          %v1000 = vmul.f32 %v963, %v997
          %v1004 = vrot.slane %v998, 2
          %v1005 = vrot.slane %v999, 2
          %v1006 = vsel %vm459, %v1004, %v1005
          %v1007 = vrot.slane %v1000, 2
          %v1008 = vsel %vm459, %v1005, %v1007
          %v1011 = vadd.f32 %v991, %v1006
          %v1012 = vadd.f32 %v992, %v1008
          %v1013 = vld [vmem:[%s333 + $0x1f] sm:$0x1]
          %v1014 = vlaneseq
          %v1015 = vshrl.u32 %v1014, 7
          %v1016 = vsub.s32 0, %v1015
          %v1017 = vrot.slane %v1013, %v1016
          %v1018 = vmul.f32 %v961, %v1017
          %v1019 = vmul.f32 %v962, %v1017
          %v1020 = vmul.f32 %v963, %v1017
          %v1024 = vrot.slane %v1018, 3
          %v1025 = vrot.slane %v1019, 3
          %v1026 = vsel %vm480, %v1024, %v1025
          %v1027 = vrot.slane %v1020, 3
          %v1028 = vsel %vm480, %v1025, %v1027
          %v1031 = vadd.f32 %v1011, %v1026
          %v1032 = vadd.f32 %v1012, %v1028
          %v1033 = vld [vmem:[%s333 + $0x20] sm:$0x1]
          %v1034 = vlaneseq
          %v1035 = vshrl.u32 %v1034, 7
          %v1036 = vsub.s32 0, %v1035
          %v1037 = vrot.slane %v1033, %v1036
          %v1038 = vmul.f32 %v961, %v1037
          %v1039 = vmul.f32 %v962, %v1037
          %v1040 = vmul.f32 %v963, %v1037
          %v1044 = vrot.slane %v1038, 4
          %v1045 = vrot.slane %v1039, 4
          %v1046 = vsel %vm501, %v1044, %v1045
          %v1047 = vrot.slane %v1040, 4
          %v1048 = vsel %vm501, %v1045, %v1047
          %v1051 = vadd.f32 %v1031, %v1046
          %v1052 = vadd.f32 %v1032, %v1048
          %v1053 = vld [vmem:[%s333 + $0x21] sm:$0x1]
          %v1054 = vlaneseq
          %v1055 = vshrl.u32 %v1054, 7
          %v1056 = vsub.s32 0, %v1055
          %v1057 = vrot.slane %v1053, %v1056
          %v1058 = vmul.f32 %v961, %v1057
          %v1059 = vmul.f32 %v962, %v1057
          %v1060 = vmul.f32 %v963, %v1057
          %v1064 = vrot.slane %v1058, 5
          %v1065 = vrot.slane %v1059, 5
          %v1066 = vsel %vm522, %v1064, %v1065
          %v1067 = vrot.slane %v1060, 5
          %v1068 = vsel %vm522, %v1065, %v1067
          %v1071 = vadd.f32 %v1051, %v1066
          %v1072 = vadd.f32 %v1052, %v1068
          %v1073 = vld [vmem:[%s333 + $0x22] sm:$0x1]
          %v1074 = vlaneseq
          %v1075 = vshrl.u32 %v1074, 7
          %v1076 = vsub.s32 0, %v1075
          %v1077 = vrot.slane %v1073, %v1076
          %v1078 = vmul.f32 %v961, %v1077
          %v1079 = vmul.f32 %v962, %v1077
          %v1080 = vmul.f32 %v963, %v1077
          %v1084 = vrot.slane %v1078, 6
          %v1085 = vrot.slane %v1079, 6
          %v1086 = vsel %vm543, %v1084, %v1085
          %v1087 = vrot.slane %v1080, 6
          %v1088 = vsel %vm543, %v1085, %v1087
          %v1091 = vadd.f32 %v1071, %v1086
          %v1092 = vadd.f32 %v1072, %v1088
          %s1093 = sadd.s32 %s402, 5
          %s1094 = smul.u32 %s1093, 24
          %s1095 = scalar_lea.vmem [#allocation2], %s1094
          %v1096 = vld [vmem:[%s1095] sm:$0xff]
          %v1097 = vld [vmem:[%s1095 + $0x8] sm:$0xff]
          %v1098 = vld [vmem:[%s1095 + $0x10] sm:$0x3f]
          %v1099 = vld [vmem:[%s333 + $0x23] sm:$0x1]
          %v1100 = vlaneseq
          %v1101 = vshrl.u32 %v1100, 7
          %v1102 = vsub.s32 0, %v1101
          %v1103 = vrot.slane %v1099, %v1102
          %v1104 = vmul.f32 %v1096, %v1103
          %v1105 = vmul.f32 %v1097, %v1103
          %v1106 = vadd.f32 %v1091, %v1104
          %v1107 = vadd.f32 %v1092, %v1105
          %v1108 = vld [vmem:[%s333 + $0x24] sm:$0x1]
          %v1109 = vlaneseq
          %v1110 = vshrl.u32 %v1109, 7
          %v1111 = vsub.s32 0, %v1110
          %v1112 = vrot.slane %v1108, %v1111
          %v1113 = vmul.f32 %v1096, %v1112
          %v1114 = vmul.f32 %v1097, %v1112
          %v1115 = vmul.f32 %v1098, %v1112
          %v1119 = vrot.slane %v1113, 1
          %v1120 = vrot.slane %v1114, 1
          %v1121 = vsel %vm438, %v1119, %v1120
          %v1122 = vrot.slane %v1115, 1
          %v1123 = vsel %vm438, %v1120, %v1122
          %v1126 = vadd.f32 %v1106, %v1121
          %v1127 = vadd.f32 %v1107, %v1123
          %v1128 = vld [vmem:[%s333 + $0x25] sm:$0x1]
          %v1129 = vlaneseq
          %v1130 = vshrl.u32 %v1129, 7
          %v1131 = vsub.s32 0, %v1130
          %v1132 = vrot.slane %v1128, %v1131
          %v1133 = vmul.f32 %v1096, %v1132
          %v1134 = vmul.f32 %v1097, %v1132
          %v1135 = vmul.f32 %v1098, %v1132
          %v1139 = vrot.slane %v1133, 2
          %v1140 = vrot.slane %v1134, 2
          %v1141 = vsel %vm459, %v1139, %v1140
          %v1142 = vrot.slane %v1135, 2
          %v1143 = vsel %vm459, %v1140, %v1142
          %v1146 = vadd.f32 %v1126, %v1141
          %v1147 = vadd.f32 %v1127, %v1143
          %v1148 = vld [vmem:[%s333 + $0x26] sm:$0x1]
          %v1149 = vlaneseq
          %v1150 = vshrl.u32 %v1149, 7
          %v1151 = vsub.s32 0, %v1150
          %v1152 = vrot.slane %v1148, %v1151
          %v1153 = vmul.f32 %v1096, %v1152
          %v1154 = vmul.f32 %v1097, %v1152
          %v1155 = vmul.f32 %v1098, %v1152
          %v1159 = vrot.slane %v1153, 3
          %v1160 = vrot.slane %v1154, 3
          %v1161 = vsel %vm480, %v1159, %v1160
          %v1162 = vrot.slane %v1155, 3
          %v1163 = vsel %vm480, %v1160, %v1162
          %v1166 = vadd.f32 %v1146, %v1161
          %v1167 = vadd.f32 %v1147, %v1163
          %v1168 = vld [vmem:[%s333 + $0x27] sm:$0x1]
          %v1169 = vlaneseq
          %v1170 = vshrl.u32 %v1169, 7
          %v1171 = vsub.s32 0, %v1170
          %v1172 = vrot.slane %v1168, %v1171
          %v1173 = vmul.f32 %v1096, %v1172
          %v1174 = vmul.f32 %v1097, %v1172
          %v1175 = vmul.f32 %v1098, %v1172
          %v1179 = vrot.slane %v1173, 4
          %v1180 = vrot.slane %v1174, 4
          %v1181 = vsel %vm501, %v1179, %v1180
          %v1182 = vrot.slane %v1175, 4
          %v1183 = vsel %vm501, %v1180, %v1182
          %v1186 = vadd.f32 %v1166, %v1181
          %v1187 = vadd.f32 %v1167, %v1183
          %v1188 = vld [vmem:[%s333 + $0x28] sm:$0x1]
          %v1189 = vlaneseq
          %v1190 = vshrl.u32 %v1189, 7
          %v1191 = vsub.s32 0, %v1190
          %v1192 = vrot.slane %v1188, %v1191
          %v1193 = vmul.f32 %v1096, %v1192
          %v1194 = vmul.f32 %v1097, %v1192
          %v1195 = vmul.f32 %v1098, %v1192
          %v1199 = vrot.slane %v1193, 5
          %v1200 = vrot.slane %v1194, 5
          %v1201 = vsel %vm522, %v1199, %v1200
          %v1202 = vrot.slane %v1195, 5
          %v1203 = vsel %vm522, %v1200, %v1202
          %v1206 = vadd.f32 %v1186, %v1201
          %v1207 = vadd.f32 %v1187, %v1203
          %v1208 = vld [vmem:[%s333 + $0x29] sm:$0x1]
          %v1209 = vlaneseq
          %v1210 = vshrl.u32 %v1209, 7
          %v1211 = vsub.s32 0, %v1210
          %v1212 = vrot.slane %v1208, %v1211
          %v1213 = vmul.f32 %v1096, %v1212
          %v1214 = vmul.f32 %v1097, %v1212
          %v1215 = vmul.f32 %v1098, %v1212
          %v1219 = vrot.slane %v1213, 6
          %v1220 = vrot.slane %v1214, 6
          %v1221 = vsel %vm543, %v1219, %v1220
          %v1222 = vrot.slane %v1215, 6
          %v1223 = vsel %vm543, %v1220, %v1222
          %v1226 = vadd.f32 %v1206, %v1221
          %v1227 = vadd.f32 %v1207, %v1223
          %s1228 = sadd.s32 %s402, 6
          %s1229 = smul.u32 %s1228, 24
          %s1230 = scalar_lea.vmem [#allocation2], %s1229
          %v1231 = vld [vmem:[%s1230] sm:$0xff]
          %v1232 = vld [vmem:[%s1230 + $0x8] sm:$0xff]
          %v1233 = vld [vmem:[%s1230 + $0x10] sm:$0x3f]
          %v1234 = vld [vmem:[%s333 + $0x2a] sm:$0x1]
          %v1235 = vlaneseq
          %v1236 = vshrl.u32 %v1235, 7
          %v1237 = vsub.s32 0, %v1236
          %v1238 = vrot.slane %v1234, %v1237
          %v1239 = vmul.f32 %v1231, %v1238
          %v1240 = vmul.f32 %v1232, %v1238
          %v1241 = vadd.f32 %v1226, %v1239
          %v1242 = vadd.f32 %v1227, %v1240
          %v1243 = vld [vmem:[%s333 + $0x2b] sm:$0x1]
          %v1244 = vlaneseq
          %v1245 = vshrl.u32 %v1244, 7
          %v1246 = vsub.s32 0, %v1245
          %v1247 = vrot.slane %v1243, %v1246
          %v1248 = vmul.f32 %v1231, %v1247
          %v1249 = vmul.f32 %v1232, %v1247
          %v1250 = vmul.f32 %v1233, %v1247
          %v1254 = vrot.slane %v1248, 1
          %v1255 = vrot.slane %v1249, 1
          %v1256 = vsel %vm438, %v1254, %v1255
          %v1257 = vrot.slane %v1250, 1
          %v1258 = vsel %vm438, %v1255, %v1257
          %v1261 = vadd.f32 %v1241, %v1256
          %v1262 = vadd.f32 %v1242, %v1258
          %v1263 = vld [vmem:[%s333 + $0x2c] sm:$0x1]
          %v1264 = vlaneseq
          %v1265 = vshrl.u32 %v1264, 7
          %v1266 = vsub.s32 0, %v1265
          %v1267 = vrot.slane %v1263, %v1266
          %v1268 = vmul.f32 %v1231, %v1267
          %v1269 = vmul.f32 %v1232, %v1267
          %v1270 = vmul.f32 %v1233, %v1267
          %v1274 = vrot.slane %v1268, 2
          %v1275 = vrot.slane %v1269, 2
          %v1276 = vsel %vm459, %v1274, %v1275
          %v1277 = vrot.slane %v1270, 2
          %v1278 = vsel %vm459, %v1275, %v1277
          %v1281 = vadd.f32 %v1261, %v1276
          %v1282 = vadd.f32 %v1262, %v1278
          %v1283 = vld [vmem:[%s333 + $0x2d] sm:$0x1]
          %v1284 = vlaneseq
          %v1285 = vshrl.u32 %v1284, 7
          %v1286 = vsub.s32 0, %v1285
          %v1287 = vrot.slane %v1283, %v1286
          %v1288 = vmul.f32 %v1231, %v1287
          %v1289 = vmul.f32 %v1232, %v1287
          %v1290 = vmul.f32 %v1233, %v1287
          %v1294 = vrot.slane %v1288, 3
          %v1295 = vrot.slane %v1289, 3
          %v1296 = vsel %vm480, %v1294, %v1295
          %v1297 = vrot.slane %v1290, 3
          %v1298 = vsel %vm480, %v1295, %v1297
          %v1301 = vadd.f32 %v1281, %v1296
          %v1302 = vadd.f32 %v1282, %v1298
          %v1303 = vld [vmem:[%s333 + $0x2e] sm:$0x1]
          %v1304 = vlaneseq
          %v1305 = vshrl.u32 %v1304, 7
          %v1306 = vsub.s32 0, %v1305
          %v1307 = vrot.slane %v1303, %v1306
          %v1308 = vmul.f32 %v1231, %v1307
          %v1309 = vmul.f32 %v1232, %v1307
          %v1310 = vmul.f32 %v1233, %v1307
          %v1314 = vrot.slane %v1308, 4
          %v1315 = vrot.slane %v1309, 4
          %v1316 = vsel %vm501, %v1314, %v1315
          %v1317 = vrot.slane %v1310, 4
          %v1318 = vsel %vm501, %v1315, %v1317
          %v1321 = vadd.f32 %v1301, %v1316
          %v1322 = vadd.f32 %v1302, %v1318
          %v1323 = vld [vmem:[%s333 + $0x2f] sm:$0x1]
          %v1324 = vlaneseq
          %v1325 = vshrl.u32 %v1324, 7
          %v1326 = vsub.s32 0, %v1325
          %v1327 = vrot.slane %v1323, %v1326
          %v1328 = vmul.f32 %v1231, %v1327
          %v1329 = vmul.f32 %v1232, %v1327
          %v1330 = vmul.f32 %v1233, %v1327
          %v1334 = vrot.slane %v1328, 5
          %v1335 = vrot.slane %v1329, 5
          %v1336 = vsel %vm522, %v1334, %v1335
          %v1337 = vrot.slane %v1330, 5
          %v1338 = vsel %vm522, %v1335, %v1337
          %v1341 = vadd.f32 %v1321, %v1336
          %v1342 = vadd.f32 %v1322, %v1338
          %v1343 = vld [vmem:[%s333 + $0x30] sm:$0x1]
          %v1344 = vlaneseq
          %v1345 = vshrl.u32 %v1344, 7
          %v1346 = vsub.s32 0, %v1345
          %v1347 = vrot.slane %v1343, %v1346
          %v1348 = vmul.f32 %v1231, %v1347
          %v1349 = vmul.f32 %v1232, %v1347
          %v1350 = vmul.f32 %v1233, %v1347
          %v1354 = vrot.slane %v1348, 6
          %v1355 = vrot.slane %v1349, 6
          %v1356 = vsel %vm543, %v1354, %v1355
          %v1357 = vrot.slane %v1350, 6
          %v1358 = vsel %vm543, %v1355, %v1357
          %v1361 = vadd.f32 %v1341, %v1356
          %v1362 = vadd.f32 %v1342, %v1358
          %s1363 = smul.u32 %s402, 16
          %s1364 = scalar_lea.vmem %s299, %s1363 [#allocation3]
          %1365 = vst [vmem:[%s1364] sm:$0xff] %v1361
          %1366 = vst [vmem:[%s1364 + $0x8] sm:$0xff] %v1362
        $region48: #{tpu_custom_call.1} parent=35 // loop_footer
          %s406 = sadd.s32 1, %s402
        $region49: #{tpu_custom_call.1} parent=35 // loop_footer_branch
          %401 = sbr.rel target = $region45
        $region50: #{tpu_custom_call.1} parent=35 // loop_exit
          _
        %s1367 = sand.u32 %s163, 1
        %s1368 = scalar_lea.sflag [#allocation4], %s1367
        %s1369 = sand.u32 %s163, 1
        %s1370 = smul.addr %s1369, 128
        %s1371 = scalar_lea.vmem [#allocation3], %s1370
        // Predicated region
        $region51: #{tpu_custom_call.1} parent=35 // pred_check
          %p1372 = pneg %p173
        $region52: #{tpu_custom_call.1} parent=35 // pred_check_branch
          %1374 = sbr.rel (%p1372) target = $region54
        $region53: #{tpu_custom_call.1} parent=35 // pred_region
          %s1375 = smul.u32 8, %s25
          %s1377 = ssub.s32 2048, 2048
          %1378 = vsyncadd %s1368, %s1377
          %s1379 = smul.addr %s1375, 2
          %s1380 = sadd.s32 %s24, %s1379
          %s1381 = smul.addr %s23, 32
          %s1382 = sadd.s32 %s1380, %s1381
          %s1383 = smul.addr %s1382, 128
          %s1384 = scalar_lea.hbm %s4, %s1383
          %s1385 = sshll.u32 %s1371, 4
          %s1386 = int_to_ptr.vmem [resolvable:$true] %s1385
          %1391 = dma.vmem_to_hbm [thread:$0]  %s1386, 2048, %s1384, %s1368, 128, 128, 8
        $region54: #{tpu_custom_call.1} parent=35 // pred_fallthru
          _
      $region36: #{tpu_custom_call.1} parent=5 // pred_fallthru
        _
      %p1392 = scmp.le.s32.totalorder 2, %s13
      // Predicated region
      $region55: #{tpu_custom_call.1} parent=5 // pred_check
        %p1393 = pneg %p1392
      $region56: #{tpu_custom_call.1} parent=5 // pred_check_branch
        %1395 = sbr.rel (%p1393) target = $region58
      $region57: #{tpu_custom_call.1} parent=5 // pred_region
        %s1396 = ssub.s32 %s13, 2
        // Predicated region
        $region59: #{tpu_custom_call.1} parent=57 // pred_check
          %p1397 = pneg %p179
        $region60: #{tpu_custom_call.1} parent=57 // pred_check_branch
          %1399 = sbr.rel (%p1397) target = $region62
        $region61: #{tpu_custom_call.1} parent=57 // pred_region
          %s1400 = sand.u32 %s164, 1
          %s1401 = scalar_lea.sflag [#allocation4], %s1400
          %s1402 = sand.u32 %s164, 1
          %s1403 = smul.addr %s1402, 128
          %s1404 = scalar_lea.vmem [#allocation3], %s1403
          %1405 = dma.done %s1401, 2048
        $region62: #{tpu_custom_call.1} parent=57 // pred_fallthru
          _
      $region58: #{tpu_custom_call.1} parent=5 // pred_fallthru
        _
    $region6: #{tpu_custom_call.1} parent=1 // loop_footer
      %s17 = sadd.s32 1, %s13
    $region7: #{tpu_custom_call.1} parent=1 // loop_footer_branch
      %12 = sbr.rel target = $region3
    $region8: #{tpu_custom_call.1} parent=1 // loop_exit
      _
    %1406 = vsyncpa [#allocation4], 1
    %s1407 = scalar_lea.sflag [#allocation4], 1
    %1408 = vsyncpa %s1407, 1

</llo_original>
